<compile_context>
chip_gen: v7x
topology: tpu7x:2x2x1
jax: 0.10.0
libtpu: 0.0.40
codegen_flags: <defaults>
</compile_context>

<pallas_src>
from typing import NamedTuple

import jax
import jax.numpy as jnp
from jax.experimental import pallas as pl
from jax.experimental.pallas import tpu as pltpu

_VMEM_LIMIT = 32 * 1024 * 1024  # <= ~half of v7x's 64 MiB VMEM; fine on v5e/v6e
_NEG = -1e9


def _round_up(x: int, m: int) -> int:
    return ((x + m - 1) // m) * m


def _pick_batch_block(b: int) -> int:
    """Images per grid step: amortize per-step overhead, but keep >=2 grid
    steps whenever B >= 2 so both v7x TensorCores get work."""
    if b >= 16:
        return 8
    if b >= 2:
        return max(1, b // 2)
    return 1


# ------------------------------ Pallas kernel ------------------------------ #

def _fused_kernel(pos_ref, patches_ref, wconv_ref, bconv_ref, whead_ref,
                  bhead_ref, maskbias_ref, mlogp_ref, slogp_ref, pooled_ref,
                  xmap_sc, feat_sc):
    """Fused base conv + critic pool + unit gather + main/sap actor heads.

    One grid step = BB images.  patches_ref is the pre-im2col'd lane-dense
    bf16 patch matrix; the conv is one MXU dot per image.  The feature map
    lives only in VMEM scratch (never written to HBM); unit rows are gathered
    from it with scalar-prefetched flat positions.
    """
    bb, hw, _ = patches_ref.shape
    u_pad = maskbias_ref.shape[1]
    n_tot = whead_ref.shape[1]
    n_main_pad = mlogp_ref.shape[2]
    n_sap_pad = slogp_ref.shape[2]

    wconv = wconv_ref[...]
    bconv = bconv_ref[...]

    # --- base: 3x3 conv (wrapper pre-im2col) + bias + ReLU, one dot / image;
    #     critic spatial mean-pool fused in (x_map never round-trips to HBM) ---
    for i in range(bb):
        f = jnp.dot(patches_ref[i], wconv, preferred_element_type=jnp.float32)
        f = jnp.maximum(f + bconv, 0.0)                      # (H*W, D_pad) f32
        xmap_sc[pl.ds(i * hw, hw), :] = f
        pooled_ref[i] = jnp.mean(f, axis=0, keepdims=True)   # (1, D_pad)

    # --- actor: gather per-unit feature rows from the VMEM feature map using
    #     the scalar-prefetched flat positions (no HBM gather round-trip) ---
    base = pl.program_id(0) * (bb * u_pad)
    for i in range(bb):
        for u in range(u_pad):
            r = i * u_pad + u
            idx = pos_ref[base + r]                          # SMEM scalar read
            feat_sc[pl.ds(r, 1), :] = xmap_sc[pl.ds(i * hw + idx, 1), :]

    # --- fused main + sap heads: ONE (rows, D) @ (D, n_main_pad + n_sap_pad)
    #     dot, additive -1e9 mask bias, then two masked log-softmaxes ---
    feat = feat_sc[...].astype(jnp.bfloat16)                 # (rows, D_pad)
    logits = jnp.dot(feat, whead_ref[...], preferred_element_type=jnp.float32)
    logits = logits + bhead_ref[...] + maskbias_ref[...].reshape(bb * u_pad, n_tot)

    def log_softmax(lg):
        m = jnp.max(lg, axis=-1, keepdims=True)
        sh = lg - m
        return sh - jnp.log(jnp.sum(jnp.exp(sh), axis=-1, keepdims=True))

    mlogp_ref[...] = log_softmax(logits[:, :n_main_pad]).reshape(bb, u_pad, n_main_pad)
    slogp_ref[...] = log_softmax(logits[:, n_main_pad:]).reshape(bb, u_pad, n_sap_pad)


# ------------------------------ call wrapper ------------------------------- #

def _fused_call(flat_pos, patches, wconv, bconv, whead, bhead, mask_bias,
                *, bb, u_pad, n_main_pad, n_sap_pad):
    b_pad, hw, k_pad = patches.shape
    d_pad = wconv.shape[1]
    n_tot = whead.shape[1]

    return pl.pallas_call(
        _fused_kernel,
        out_shape=(jax.ShapeDtypeStruct((b_pad, u_pad, n_main_pad), jnp.float32),
                   jax.ShapeDtypeStruct((b_pad, u_pad, n_sap_pad), jnp.float32),
                   jax.ShapeDtypeStruct((b_pad, 1, d_pad), jnp.float32)),
        grid_spec=pltpu.PrefetchScalarGridSpec(
            num_scalar_prefetch=1,                # flat unit positions -> SMEM
            grid=(b_pad // bb,),
            in_specs=[
                pl.BlockSpec((bb, hw, k_pad), lambda i, pos: (i, 0, 0)),   # patches
                pl.BlockSpec((k_pad, d_pad), lambda i, pos: (0, 0)),       # conv w
                pl.BlockSpec((1, d_pad), lambda i, pos: (0, 0)),           # conv b
                pl.BlockSpec((d_pad, n_tot), lambda i, pos: (0, 0)),       # head w (main|sap)
                pl.BlockSpec((1, n_tot), lambda i, pos: (0, 0)),           # head b
                pl.BlockSpec((bb, u_pad, n_tot), lambda i, pos: (i, 0, 0)),  # mask bias
            ],
            out_specs=(
                pl.BlockSpec((bb, u_pad, n_main_pad), lambda i, pos: (i, 0, 0)),
                pl.BlockSpec((bb, u_pad, n_sap_pad), lambda i, pos: (i, 0, 0)),
                pl.BlockSpec((bb, 1, d_pad), lambda i, pos: (i, 0, 0)),
            ),
            scratch_shapes=[
                pltpu.VMEM((bb * hw, d_pad), jnp.float32),      # per-step feature map
                pltpu.VMEM((bb * u_pad, d_pad), jnp.float32),   # gathered unit rows
            ],
        ),
        compiler_params=pltpu.CompilerParams(
            dimension_semantics=("parallel",),
            vmem_limit_bytes=_VMEM_LIMIT),
    )(flat_pos, patches, wconv, bconv, whead, bhead, mask_bias)


# ------------------------------- model glue -------------------------------- #

class ActorCriticOut(NamedTuple):
    main_log_probs: jax.Array  # (B, U, A_main)
    sap_log_probs: jax.Array   # (B, U, H*W)
    main_actions: jax.Array    # (B, U) int32
    sap_actions: jax.Array     # (B, U) int32
    value: jax.Array           # (B,)


def init_params(key, c_in, d_model, n_main, n_sap):
    ks = jax.random.split(key, 8)
    s = 0.1
    return {
        # torch Conv2d weight layout: (out_ch, in_ch, kh, kw)
        "conv_w": jax.random.normal(ks[0], (d_model, c_in, 3, 3), jnp.float32) * s,
        "conv_b": jax.random.normal(ks[1], (d_model,), jnp.float32) * s,
        "main_w": jax.random.normal(ks[2], (d_model, n_main), jnp.float32) * s,
        "main_b": jax.random.normal(ks[3], (1, n_main), jnp.float32) * s,
        "sap_w": jax.random.normal(ks[4], (d_model, n_sap), jnp.float32) * s,
        "sap_b": jax.random.normal(ks[5], (1, n_sap), jnp.float32) * s,
        "value_w": jax.random.normal(ks[6], (d_model, 1), jnp.float32) * s,
        "value_b": jax.random.normal(ks[7], (1, 1), jnp.float32) * s,
    }


def prepare_params(params):
    """One-time parameter re-layout (hoisted out of the per-step forward)."""
    d_model, c_in, _, _ = params["conv_w"].shape
    n_main = params["main_w"].shape[1]
    n_sap = params["sap_w"].shape[1]
    d_pad = _round_up(d_model, 128)
    k = 9 * c_in
    k_pad = _round_up(k, 128)
    n_main_pad = _round_up(n_main, 128)
    n_sap_pad = _round_up(n_sap, 128)

    # conv weight -> (9*C, D) matching im2col tap order (ky-major, kx, then c)
    wconv = jnp.transpose(params["conv_w"], (2, 3, 1, 0)).reshape(k, d_model)
    wconv = jnp.pad(wconv, ((0, k_pad - k), (0, d_pad - d_model))).astype(jnp.bfloat16)
    bconv = jnp.pad(params["conv_b"], (0, d_pad - d_model)).reshape(1, d_pad)

    # main + sap head weights/biases concatenated along the class axis
    mw = jnp.pad(params["main_w"], ((0, d_pad - d_model), (0, n_main_pad - n_main)))
    sw = jnp.pad(params["sap_w"], ((0, d_pad - d_model), (0, n_sap_pad - n_sap)))
    whead = jnp.concatenate([mw, sw], axis=1).astype(jnp.bfloat16)
    mb = jnp.pad(params["main_b"], ((0, 0), (0, n_main_pad - n_main)))
    sb = jnp.pad(params["sap_b"], ((0, 0), (0, n_sap_pad - n_sap)))
    bhead = jnp.concatenate([mb, sb], axis=1)

    vw = jnp.pad(params["value_w"][:, 0], (0, d_pad - d_model))
    vb = params["value_b"][0, 0]
    return {"wconv": wconv, "bconv": bconv, "whead": whead, "bhead": bhead,
            "vw": vw, "vb": vb}


def actor_critic_forward(prep, obs_spatial, unit_pos, main_mask, sap_mask,
                         main_action_temperature=None,
                         sap_action_temperature=None,
                         omit_value=False):
    # TODO(synk): temperature-based categorical (Gumbel) sampling; None => greedy.
    del main_action_temperature, sap_action_temperature

    b, c, h, w = obs_spatial.shape
    u = unit_pos.shape[1]
    n_main = main_mask.shape[-1]
    n_sap = sap_mask.shape[-1]
    k_pad, d_pad = prep["wconv"].shape
    n_main_pad = _round_up(n_main, 128)
    n_sap_pad = _round_up(n_sap, 128)
    assert prep["whead"].shape[1] == n_main_pad + n_sap_pad
    assert 9 * c <= k_pad

    bb = _pick_batch_block(b)
    b_pad = _round_up(b, bb)
    u_pad = _round_up(u, 8)

    # ---- per-step input prep: lane-dense im2col patches (bf16) ----
    x = jnp.transpose(obs_spatial, (0, 2, 3, 1))                 # NHWC
    x = jnp.pad(x, ((0, b_pad - b), (1, 1), (1, 1), (0, 0)))     # batch + halo pad
    taps = [x[:, dy:dy + h, dx:dx + w, :] for dy in range(3) for dx in range(3)]
    patches = jnp.concatenate(taps, axis=-1).reshape(b_pad, h * w, 9 * c)
    patches = jnp.pad(patches, ((0, 0), (0, 0), (0, k_pad - 9 * c)))
    patches = patches.astype(jnp.bfloat16)

    # flat unit positions -> SMEM scalar prefetch
    flat_pos = unit_pos[..., 0] * w + unit_pos[..., 1]
    flat_pos = jnp.pad(flat_pos, ((0, b_pad - b), (0, u_pad - u)))
    flat_pos = flat_pos.reshape(-1).astype(jnp.int32)

    # masks -> additive f32 bias (0 valid / -1e9 invalid); padding rows/cols masked
    m_bias = jnp.where(main_mask, 0.0, _NEG).astype(jnp.float32)
    s_bias = jnp.where(sap_mask, 0.0, _NEG).astype(jnp.float32)
    m_bias = jnp.pad(m_bias, ((0, b_pad - b), (0, u_pad - u), (0, n_main_pad - n_main)),
                     constant_values=_NEG)
    s_bias = jnp.pad(s_bias, ((0, b_pad - b), (0, u_pad - u), (0, n_sap_pad - n_sap)),
                     constant_values=_NEG)
    mask_bias = jnp.concatenate([m_bias, s_bias], axis=-1)       # (B_pad, U_pad, n_tot)

    main_lp_p, sap_lp_p, pooled_p = _fused_call(
        flat_pos, patches, prep["wconv"], prep["bconv"], prep["whead"],
        prep["bhead"], mask_bias,
        bb=bb, u_pad=u_pad, n_main_pad=n_main_pad, n_sap_pad=n_sap_pad)

    main_logp = main_lp_p[:b, :u, :n_main]
    sap_logp = sap_lp_p[:b, :u, :n_sap]
    # greedy actions (temperature=None); argmax on log-probs
    main_act = jnp.argmax(main_logp, axis=-1).astype(jnp.int32)
    sap_act = jnp.argmax(sap_logp, axis=-1).astype(jnp.int32)

    if omit_value:
        value = jnp.zeros((b,), dtype=main_logp.dtype)
    else:
        pooled = pooled_p[:b, 0, :]                              # (B, D_pad) f32
        value = jnp.dot(pooled, prep["vw"]) + prep["vb"]

    return ActorCriticOut(main_logp, sap_logp, main_act, sap_act, value)


# ------------------------------- reference --------------------------------- #

def reference_forward(params, obs, unit_pos, main_mask, sap_mask):
    """Pure-JAX reference mirroring the kernel numerics (bf16 in, f32 acc)."""
    b, _, h, w = obs.shape
    conv = jax.lax.conv_general_dilated(
        obs.astype(jnp.bfloat16), params["conv_w"].astype(jnp.bfloat16),
        window_strides=(1, 1), padding=((1, 1), (1, 1)),
        dimension_numbers=("NCHW", "OIHW", "NCHW"),
        preferred_element_type=jnp.float32)
    xm = jnp.maximum(conv + params["conv_b"][None, :, None, None], 0.0)  # (B,D,H,W)
    pooled = xm.mean(axis=(2, 3))
    value = pooled @ params["value_w"][:, 0] + params["value_b"][0, 0]
    xmap = jnp.transpose(xm, (0, 2, 3, 1)).reshape(b, h * w, -1)
    flat = unit_pos[..., 0] * w + unit_pos[..., 1]
    feat = xmap[jnp.arange(b)[:, None], flat, :].astype(jnp.bfloat16)

    def head(wt, bias, mask):
        lg = jnp.einsum("bud,dn->bun", feat, wt.astype(jnp.bfloat16),
                        preferred_element_type=jnp.float32) + bias[0]
        lg = jnp.where(mask, lg, jnp.float32(_NEG))
        return jax.nn.log_softmax(lg, axis=-1)

    return (head(params["main_w"], params["main_b"], main_mask),
            head(params["sap_w"], params["sap_b"], sap_mask),
            value)


# ---------------------------------- main ----------------------------------- #

if __name__ == "__main__":
    B, C, H, W = 2, 4, 16, 16
    D_MODEL, N_UNITS, N_MAIN = 32, 8, 6
    N_SAP = H * W

    key = jax.random.PRNGKey(0)
    k_obs, k_pos, k_mmask, k_smask, k_params = jax.random.split(key, 5)

    obs = jax.random.normal(k_obs, (B, C, H, W), jnp.float32)        # NCHW like torch
    unit_pos = jax.random.randint(k_pos, (B, N_UNITS, 2), 0, H, jnp.int32)
    main_mask = jax.random.bernoulli(k_mmask, 0.7, (B, N_UNITS, N_MAIN))
    main_mask = main_mask.at[..., 0].set(True)                        # ensure >=1 valid
    sap_mask = jax.random.bernoulli(k_smask, 0.3, (B, N_UNITS, N_SAP))
    sap_mask = sap_mask.at[..., 0].set(True)

    params = init_params(k_params, C, D_MODEL, N_MAIN, N_SAP)
    prep = prepare_params(params)            # one-time constant re-layout

    fwd = jax.jit(actor_critic_forward, static_argnames=("omit_value",))
    out = fwd(prep, obs, unit_pos, main_mask, sap_mask)
    jax.block_until_ready(out)

    # shape / sanity checks
    assert out.main_log_probs.shape == (B, N_UNITS, N_MAIN)
    assert out.sap_log_probs.shape == (B, N_UNITS, N_SAP)
    assert out.main_actions.shape == (B, N_UNITS)
    assert out.sap_actions.shape == (B, N_UNITS)
    assert out.value.shape == (B,)
    assert bool(jnp.all(jnp.isfinite(out.main_log_probs)))
    assert bool(jnp.all(jnp.isfinite(out.sap_log_probs)))
    assert bool(jnp.all(jnp.isfinite(out.value)))

    # correctness vs pure-JAX reference (same bf16-in / f32-accumulate policy)
    ref_mlp, ref_slp, ref_val = reference_forward(params, obs, unit_pos,
                                                  main_mask, sap_mask)
    assert bool(jnp.allclose(out.main_log_probs, ref_mlp, rtol=2e-2, atol=2e-2))
    assert bool(jnp.allclose(out.sap_log_probs, ref_slp, rtol=2e-2, atol=2e-2))
    assert bool(jnp.allclose(out.value, ref_val, rtol=2e-2, atol=2e-2))

    print("KERNEL_OK")
</pallas_src>

<mosaic_0001>
module attributes {stable_mosaic.version = 11 : i64} {
  func.func @_fused_kernel(%arg0: i32, %arg1: memref<16xi32, #tpu.memory_space<smem>>, %arg2: memref<1x256x128xbf16, #tpu.memory_space<vmem>>, %arg3: memref<128x128xbf16, #tpu.memory_space<vmem>>, %arg4: memref<1x128xf32, #tpu.memory_space<vmem>>, %arg5: memref<128x384xbf16, #tpu.memory_space<vmem>>, %arg6: memref<1x384xf32, #tpu.memory_space<vmem>>, %arg7: memref<1x8x384xf32, #tpu.memory_space<vmem>>, %arg8: memref<1x8x128xf32, #tpu.memory_space<vmem>>, %arg9: memref<1x8x256xf32, #tpu.memory_space<vmem>>, %arg10: memref<1x1x128xf32, #tpu.memory_space<vmem>>, %arg11: memref<256x128xf32, #tpu.memory_space<vmem>>, %arg12: memref<8x128xf32, #tpu.memory_space<vmem>>) attributes {dimension_semantics = [#tpu.dimension_semantics<parallel>], iteration_bounds = array<i64: 2>, scalar_prefetch = 1 : i64, scratch_operands = 2 : i64, tpu.core_type = #tpu.core_type<tc>, window_params = [{transform_indices = @transform_0, window_bounds = array<i64: 1, 256, 128>}, {pipeline_mode = #tpu.pipeline_mode<synchronous>, transform_indices = @transform_1, window_bounds = array<i64: 128, 128>}, {pipeline_mode = #tpu.pipeline_mode<synchronous>, transform_indices = @transform_2, window_bounds = array<i64: 1, 128>}, {pipeline_mode = #tpu.pipeline_mode<synchronous>, transform_indices = @transform_3, window_bounds = array<i64: 128, 384>}, {pipeline_mode = #tpu.pipeline_mode<synchronous>, transform_indices = @transform_4, window_bounds = array<i64: 1, 384>}, {transform_indices = @transform_5, window_bounds = array<i64: 1, 8, 384>}, {transform_indices = @transform_6, window_bounds = array<i64: 1, 8, 128>}, {transform_indices = @transform_7, window_bounds = array<i64: 1, 8, 256>}, {transform_indices = @transform_8, window_bounds = array<i64: 1, 1, 128>}]} {
    %c0 = arith.constant 0 : index
    %c0_0 = arith.constant 0 : index
    %0 = vector.load %arg3[%c0, %c0_0] : memref<128x128xbf16, #tpu.memory_space<vmem>>, vector<128x128xbf16>
    %c0_1 = arith.constant 0 : index
    %c0_2 = arith.constant 0 : index
    %1 = vector.load %arg4[%c0_1, %c0_2] : memref<1x128xf32, #tpu.memory_space<vmem>>, vector<1x128xf32>
    %c0_3 = arith.constant 0 : index
    %c0_4 = arith.constant 0 : index
    %c0_5 = arith.constant 0 : index
    %2 = vector.load %arg2[%c0_3, %c0_4, %c0_5] : memref<1x256x128xbf16, #tpu.memory_space<vmem>>, vector<1x256x128xbf16>
    %3 = vector.shape_cast %2 : vector<1x256x128xbf16> to vector<256x128xbf16>
    %cst = arith.constant dense<0.000000e+00> : vector<256x128xf32>
    %4 = tpu.matmul %3, %0, %cst {dimension_numbers = #tpu.dot_dimension_numbers<[1], [0], [0], [1], [0, 0, 1, 1], [], []>} : vector<256x128xbf16>, vector<128x128xbf16>, vector<256x128xf32> -> vector<256x128xf32>
    %5 = vector.broadcast %1 : vector<1x128xf32> to vector<256x128xf32>
    %6 = arith.addf %4, %5 : vector<256x128xf32>
    %cst_6 = arith.constant 0.000000e+00 : f32
    %7 = vector.broadcast %cst_6 : f32 to vector<256x128xf32>
    %8 = arith.maximumf %6, %7 : vector<256x128xf32>
    %c0_7 = arith.constant 0 : index
    %c0_8 = arith.constant 0 : index
    %9 = vector.load %arg11[%c0_7, %c0_8] : memref<256x128xf32, #tpu.memory_space<vmem>>, vector<256x128xf32>
    tpu.vector_store %arg11[%c0_7, %c0_8], %8 {strides = array<i32>} : memref<256x128xf32, #tpu.memory_space<vmem>>, vector<256x128xf32>,
    %cst_9 = arith.constant dense<0.000000e+00> : vector<128xf32>
    %10 = vector.multi_reduction <add>, %8, %cst_9 [0] : vector<256x128xf32> to vector<128xf32>
    %11 = vector.shape_cast %10 : vector<128xf32> to vector<1x128xf32>
    %cst_10 = arith.constant 2.560000e+02 : f32
    %12 = vector.broadcast %cst_10 : f32 to vector<1x128xf32>
    %13 = arith.divf %11, %12 : vector<1x128xf32>
    %c0_11 = arith.constant 0 : index
    %c0_12 = arith.constant 0 : index
    %c0_13 = arith.constant 0 : index
    %14 = vector.load %arg10[%c0_11, %c0_12, %c0_13] : memref<1x1x128xf32, #tpu.memory_space<vmem>>, vector<1x1x128xf32>
    %15 = vector.shape_cast %14 : vector<1x1x128xf32> to vector<1x128xf32>
    %16 = vector.shape_cast %13 : vector<1x128xf32> to vector<1x1x128xf32>
    tpu.vector_store %arg10[%c0_11, %c0_12, %c0_13], %16 {strides = array<i32>} : memref<1x1x128xf32, #tpu.memory_space<vmem>>, vector<1x1x128xf32>,
    %c8_i32 = arith.constant 8 : i32
    %17 = arith.muli %arg0, %c8_i32 : i32
    %c0_i32 = arith.constant 0 : i32
    %18 = arith.addi %17, %c0_i32 : i32
    %19 = arith.index_cast %18 : i32 to index
    %20 = memref.load %arg1[%19] : memref<16xi32, #tpu.memory_space<smem>>
    %c0_i32_14 = arith.constant 0 : i32
    %21 = arith.addi %c0_i32_14, %20 : i32
    %22 = arith.index_cast %21 : i32 to index
    %c0_15 = arith.constant 0 : index
    %23 = vector.load %arg11[%22, %c0_15] : memref<256x128xf32, #tpu.memory_space<vmem>>, vector<1x128xf32>
    %c0_16 = arith.constant 0 : index
    %c0_17 = arith.constant 0 : index
    %24 = vector.load %arg12[%c0_16, %c0_17] : memref<8x128xf32, #tpu.memory_space<vmem>>, vector<1x128xf32>
    tpu.vector_store %arg12[%c0_16, %c0_17], %23 {strides = array<i32>} : memref<8x128xf32, #tpu.memory_space<vmem>>, vector<1x128xf32>,
    %c1_i32 = arith.constant 1 : i32
    %25 = arith.addi %17, %c1_i32 : i32
    %26 = arith.index_cast %25 : i32 to index
    %27 = memref.load %arg1[%26] : memref<16xi32, #tpu.memory_space<smem>>
    %c0_i32_18 = arith.constant 0 : i32
    %28 = arith.addi %c0_i32_18, %27 : i32
    %29 = arith.index_cast %28 : i32 to index
    %c0_19 = arith.constant 0 : index
    %30 = vector.load %arg11[%29, %c0_19] : memref<256x128xf32, #tpu.memory_space<vmem>>, vector<1x128xf32>
    %c1 = arith.constant 1 : index
    %c0_20 = arith.constant 0 : index
    %31 = vector.load %arg12[%c1, %c0_20] : memref<8x128xf32, #tpu.memory_space<vmem>>, vector<1x128xf32>
    tpu.vector_store %arg12[%c1, %c0_20], %30 {strides = array<i32>} : memref<8x128xf32, #tpu.memory_space<vmem>>, vector<1x128xf32>,
    %c2_i32 = arith.constant 2 : i32
    %32 = arith.addi %17, %c2_i32 : i32
    %33 = arith.index_cast %32 : i32 to index
    %34 = memref.load %arg1[%33] : memref<16xi32, #tpu.memory_space<smem>>
    %c0_i32_21 = arith.constant 0 : i32
    %35 = arith.addi %c0_i32_21, %34 : i32
    %36 = arith.index_cast %35 : i32 to index
    %c0_22 = arith.constant 0 : index
    %37 = vector.load %arg11[%36, %c0_22] : memref<256x128xf32, #tpu.memory_space<vmem>>, vector<1x128xf32>
    %c2 = arith.constant 2 : index
    %c0_23 = arith.constant 0 : index
    %38 = vector.load %arg12[%c2, %c0_23] : memref<8x128xf32, #tpu.memory_space<vmem>>, vector<1x128xf32>
    tpu.vector_store %arg12[%c2, %c0_23], %37 {strides = array<i32>} : memref<8x128xf32, #tpu.memory_space<vmem>>, vector<1x128xf32>,
    %c3_i32 = arith.constant 3 : i32
    %39 = arith.addi %17, %c3_i32 : i32
    %40 = arith.index_cast %39 : i32 to index
    %41 = memref.load %arg1[%40] : memref<16xi32, #tpu.memory_space<smem>>
    %c0_i32_24 = arith.constant 0 : i32
    %42 = arith.addi %c0_i32_24, %41 : i32
    %43 = arith.index_cast %42 : i32 to index
    %c0_25 = arith.constant 0 : index
    %44 = vector.load %arg11[%43, %c0_25] : memref<256x128xf32, #tpu.memory_space<vmem>>, vector<1x128xf32>
    %c3 = arith.constant 3 : index
    %c0_26 = arith.constant 0 : index
    %45 = vector.load %arg12[%c3, %c0_26] : memref<8x128xf32, #tpu.memory_space<vmem>>, vector<1x128xf32>
    tpu.vector_store %arg12[%c3, %c0_26], %44 {strides = array<i32>} : memref<8x128xf32, #tpu.memory_space<vmem>>, vector<1x128xf32>,
    %c4_i32 = arith.constant 4 : i32
    %46 = arith.addi %17, %c4_i32 : i32
    %47 = arith.index_cast %46 : i32 to index
    %48 = memref.load %arg1[%47] : memref<16xi32, #tpu.memory_space<smem>>
    %c0_i32_27 = arith.constant 0 : i32
    %49 = arith.addi %c0_i32_27, %48 : i32
    %50 = arith.index_cast %49 : i32 to index
    %c0_28 = arith.constant 0 : index
    %51 = vector.load %arg11[%50, %c0_28] : memref<256x128xf32, #tpu.memory_space<vmem>>, vector<1x128xf32>
    %c4 = arith.constant 4 : index
    %c0_29 = arith.constant 0 : index
    %52 = vector.load %arg12[%c4, %c0_29] : memref<8x128xf32, #tpu.memory_space<vmem>>, vector<1x128xf32>
    tpu.vector_store %arg12[%c4, %c0_29], %51 {strides = array<i32>} : memref<8x128xf32, #tpu.memory_space<vmem>>, vector<1x128xf32>,
    %c5_i32 = arith.constant 5 : i32
    %53 = arith.addi %17, %c5_i32 : i32
    %54 = arith.index_cast %53 : i32 to index
    %55 = memref.load %arg1[%54] : memref<16xi32, #tpu.memory_space<smem>>
    %c0_i32_30 = arith.constant 0 : i32
    %56 = arith.addi %c0_i32_30, %55 : i32
    %57 = arith.index_cast %56 : i32 to index
    %c0_31 = arith.constant 0 : index
    %58 = vector.load %arg11[%57, %c0_31] : memref<256x128xf32, #tpu.memory_space<vmem>>, vector<1x128xf32>
    %c5 = arith.constant 5 : index
    %c0_32 = arith.constant 0 : index
    %59 = vector.load %arg12[%c5, %c0_32] : memref<8x128xf32, #tpu.memory_space<vmem>>, vector<1x128xf32>
    tpu.vector_store %arg12[%c5, %c0_32], %58 {strides = array<i32>} : memref<8x128xf32, #tpu.memory_space<vmem>>, vector<1x128xf32>,
    %c6_i32 = arith.constant 6 : i32
    %60 = arith.addi %17, %c6_i32 : i32
    %61 = arith.index_cast %60 : i32 to index
    %62 = memref.load %arg1[%61] : memref<16xi32, #tpu.memory_space<smem>>
    %c0_i32_33 = arith.constant 0 : i32
    %63 = arith.addi %c0_i32_33, %62 : i32
    %64 = arith.index_cast %63 : i32 to index
    %c0_34 = arith.constant 0 : index
    %65 = vector.load %arg11[%64, %c0_34] : memref<256x128xf32, #tpu.memory_space<vmem>>, vector<1x128xf32>
    %c6 = arith.constant 6 : index
    %c0_35 = arith.constant 0 : index
    %66 = vector.load %arg12[%c6, %c0_35] : memref<8x128xf32, #tpu.memory_space<vmem>>, vector<1x128xf32>
    tpu.vector_store %arg12[%c6, %c0_35], %65 {strides = array<i32>} : memref<8x128xf32, #tpu.memory_space<vmem>>, vector<1x128xf32>,
    %c7_i32 = arith.constant 7 : i32
    %67 = arith.addi %17, %c7_i32 : i32
    %68 = arith.index_cast %67 : i32 to index
    %69 = memref.load %arg1[%68] : memref<16xi32, #tpu.memory_space<smem>>
    %c0_i32_36 = arith.constant 0 : i32
    %70 = arith.addi %c0_i32_36, %69 : i32
    %71 = arith.index_cast %70 : i32 to index
    %c0_37 = arith.constant 0 : index
    %72 = vector.load %arg11[%71, %c0_37] : memref<256x128xf32, #tpu.memory_space<vmem>>, vector<1x128xf32>
    %c7 = arith.constant 7 : index
    %c0_38 = arith.constant 0 : index
    %73 = vector.load %arg12[%c7, %c0_38] : memref<8x128xf32, #tpu.memory_space<vmem>>, vector<1x128xf32>
    tpu.vector_store %arg12[%c7, %c0_38], %72 {strides = array<i32>} : memref<8x128xf32, #tpu.memory_space<vmem>>, vector<1x128xf32>,
    %c0_39 = arith.constant 0 : index
    %c0_40 = arith.constant 0 : index
    %74 = vector.load %arg12[%c0_39, %c0_40] : memref<8x128xf32, #tpu.memory_space<vmem>>, vector<8x128xf32>
    %75 = arith.truncf %74 : vector<8x128xf32> to vector<8x128xbf16>
    %c0_41 = arith.constant 0 : index
    %c0_42 = arith.constant 0 : index
    %76 = vector.load %arg5[%c0_41, %c0_42] : memref<128x384xbf16, #tpu.memory_space<vmem>>, vector<128x384xbf16>
    %cst_43 = arith.constant dense<0.000000e+00> : vector<8x384xf32>
    %77 = tpu.matmul %75, %76, %cst_43 {dimension_numbers = #tpu.dot_dimension_numbers<[1], [0], [0], [1], [0, 0, 1, 1], [], []>} : vector<8x128xbf16>, vector<128x384xbf16>, vector<8x384xf32> -> vector<8x384xf32>
    %c0_44 = arith.constant 0 : index
    %c0_45 = arith.constant 0 : index
    %78 = vector.load %arg6[%c0_44, %c0_45] : memref<1x384xf32, #tpu.memory_space<vmem>>, vector<1x384xf32>
    %79 = vector.broadcast %78 : vector<1x384xf32> to vector<8x384xf32>
    %80 = arith.addf %77, %79 : vector<8x384xf32>
    %c0_46 = arith.constant 0 : index
    %c0_47 = arith.constant 0 : index
    %c0_48 = arith.constant 0 : index
    %81 = vector.load %arg7[%c0_46, %c0_47, %c0_48] : memref<1x8x384xf32, #tpu.memory_space<vmem>>, vector<1x8x384xf32>
    %82 = vector.shape_cast %81 : vector<1x8x384xf32> to vector<8x384xf32>
    %83 = arith.addf %80, %82 : vector<8x384xf32>
    %84 = vector.extract_strided_slice %83 {offsets = [0, 0], sizes = [8, 128], strides = [1, 1]} : vector<8x384xf32> to vector<8x128xf32>
    %cst_49 = arith.constant dense<0xFF800000> : vector<8xf32>
    %85 = vector.multi_reduction <maximumf>, %84, %cst_49 [1] : vector<8x128xf32> to vector<8xf32>
    %86 = vector.shape_cast %85 : vector<8xf32> to vector<8x1xf32>
    %87 = vector.broadcast %86 : vector<8x1xf32> to vector<8x128xf32>
    %88 = arith.subf %84, %87 : vector<8x128xf32>
    %89 = math.exp %88 : vector<8x128xf32>
    %cst_50 = arith.constant dense<0.000000e+00> : vector<8xf32>
    %90 = vector.multi_reduction <add>, %89, %cst_50 [1] : vector<8x128xf32> to vector<8xf32>
    %91 = vector.shape_cast %90 : vector<8xf32> to vector<8x1xf32>
    %92 = math.log %91 : vector<8x1xf32>
    %93 = vector.broadcast %92 : vector<8x1xf32> to vector<8x128xf32>
    %94 = arith.subf %88, %93 : vector<8x128xf32>
    %95 = vector.shape_cast %94 : vector<8x128xf32> to vector<1x8x128xf32>
    %c0_51 = arith.constant 0 : index
    %c0_52 = arith.constant 0 : index
    %c0_53 = arith.constant 0 : index
    %96 = vector.load %arg8[%c0_51, %c0_52, %c0_53] : memref<1x8x128xf32, #tpu.memory_space<vmem>>, vector<1x8x128xf32>
    tpu.vector_store %arg8[%c0_51, %c0_52, %c0_53], %95 {strides = array<i32>} : memref<1x8x128xf32, #tpu.memory_space<vmem>>, vector<1x8x128xf32>,
    %97 = vector.extract_strided_slice %83 {offsets = [0, 128], sizes = [8, 256], strides = [1, 1]} : vector<8x384xf32> to vector<8x256xf32>
    %cst_54 = arith.constant dense<0xFF800000> : vector<8xf32>
    %98 = vector.multi_reduction <maximumf>, %97, %cst_54 [1] : vector<8x256xf32> to vector<8xf32>
    %99 = vector.shape_cast %98 : vector<8xf32> to vector<8x1xf32>
    %100 = vector.broadcast %99 : vector<8x1xf32> to vector<8x256xf32>
    %101 = arith.subf %97, %100 : vector<8x256xf32>
    %102 = math.exp %101 : vector<8x256xf32>
    %cst_55 = arith.constant dense<0.000000e+00> : vector<8xf32>
    %103 = vector.multi_reduction <add>, %102, %cst_55 [1] : vector<8x256xf32> to vector<8xf32>
    %104 = vector.shape_cast %103 : vector<8xf32> to vector<8x1xf32>
    %105 = math.log %104 : vector<8x1xf32>
    %106 = vector.broadcast %105 : vector<8x1xf32> to vector<8x256xf32>
    %107 = arith.subf %101, %106 : vector<8x256xf32>
    %108 = vector.shape_cast %107 : vector<8x256xf32> to vector<1x8x256xf32>
    %c0_56 = arith.constant 0 : index
    %c0_57 = arith.constant 0 : index
    %c0_58 = arith.constant 0 : index
    %109 = vector.load %arg9[%c0_56, %c0_57, %c0_58] : memref<1x8x256xf32, #tpu.memory_space<vmem>>, vector<1x8x256xf32>
    tpu.vector_store %arg9[%c0_56, %c0_57, %c0_58], %108 {strides = array<i32>} : memref<1x8x256xf32, #tpu.memory_space<vmem>>, vector<1x8x256xf32>,
    return
  }
  func.func @transform_0(%arg0: i32, %arg1: memref<16xi32, #tpu.memory_space<smem>>) -> (i32, i32, i32) {
    %c0_i32 = arith.constant 0 : i32
    %c0_i32_0 = arith.constant 0 : i32
    %c0_i32_1 = arith.constant 0 : i32
    return %arg0, %c0_i32, %c0_i32_0 : i32, i32, i32
  }
  func.func @transform_1(%arg0: i32, %arg1: memref<16xi32, #tpu.memory_space<smem>>) -> (i32, i32) {
    %c0_i32 = arith.constant 0 : i32
    %c0_i32_0 = arith.constant 0 : i32
    %c0_i32_1 = arith.constant 0 : i32
    return %c0_i32, %c0_i32_0 : i32, i32
  }
  func.func @transform_2(%arg0: i32, %arg1: memref<16xi32, #tpu.memory_space<smem>>) -> (i32, i32) {
    %c0_i32 = arith.constant 0 : i32
    %c0_i32_0 = arith.constant 0 : i32
    %c0_i32_1 = arith.constant 0 : i32
    return %c0_i32, %c0_i32_0 : i32, i32
  }
  func.func @transform_3(%arg0: i32, %arg1: memref<16xi32, #tpu.memory_space<smem>>) -> (i32, i32) {
    %c0_i32 = arith.constant 0 : i32
    %c0_i32_0 = arith.constant 0 : i32
    %c0_i32_1 = arith.constant 0 : i32
    return %c0_i32, %c0_i32_0 : i32, i32
  }
  func.func @transform_4(%arg0: i32, %arg1: memref<16xi32, #tpu.memory_space<smem>>) -> (i32, i32) {
    %c0_i32 = arith.constant 0 : i32
    %c0_i32_0 = arith.constant 0 : i32
    %c0_i32_1 = arith.constant 0 : i32
    return %c0_i32, %c0_i32_0 : i32, i32
  }
  func.func @transform_5(%arg0: i32, %arg1: memref<16xi32, #tpu.memory_space<smem>>) -> (i32, i32, i32) {
    %c0_i32 = arith.constant 0 : i32
    %c0_i32_0 = arith.constant 0 : i32
    %c0_i32_1 = arith.constant 0 : i32
    return %arg0, %c0_i32, %c0_i32_0 : i32, i32, i32
  }
  func.func @transform_6(%arg0: i32, %arg1: memref<16xi32, #tpu.memory_space<smem>>) -> (i32, i32, i32) {
    %c0_i32 = arith.constant 0 : i32
    %c0_i32_0 = arith.constant 0 : i32
    %c0_i32_1 = arith.constant 0 : i32
    return %arg0, %c0_i32, %c0_i32_0 : i32, i32, i32
  }
  func.func @transform_7(%arg0: i32, %arg1: memref<16xi32, #tpu.memory_space<smem>>) -> (i32, i32, i32) {
    %c0_i32 = arith.constant 0 : i32
    %c0_i32_0 = arith.constant 0 : i32
    %c0_i32_1 = arith.constant 0 : i32
    return %arg0, %c0_i32, %c0_i32_0 : i32, i32, i32
  }
  func.func @transform_8(%arg0: i32, %arg1: memref<16xi32, #tpu.memory_space<smem>>) -> (i32, i32, i32) {
    %c0_i32 = arith.constant 0 : i32
    %c0_i32_0 = arith.constant 0 : i32
    %c0_i32_1 = arith.constant 0 : i32
    return %arg0, %c0_i32, %c0_i32_0 : i32, i32, i32
  }
}

</mosaic_0001>

<llo_original>
// kernel: actor_critic_forward.1
$region0: #{actor_critic_forward.1}
  #allocation0 [shape = 'u32[]', space=smem, size = 0x4, offset = 0x4, fixed_abs, tag = 'smem constant byte address 0x4 - core index']
  #allocation1 [shape = 'u32[144,128]{1,0:T(1,128)}', space=vmem, size = 0x12000, scoped, tag = 'internal scratch']
  #allocation2 [shape = 'f32[256,128]{1,0:T(8,128)}', space=vmem, size = 0x20000, scoped, tag = 'scratch operand']
  #allocation3 [shape = 'f32[8,128]{1,0:T(8,128)}', space=vmem, size = 0x1000, scoped, tag = 'scratch operand']
  #allocation4 [shape = 's32[1]{0}', space=sflag, size = 0x4, scoped, tag = 'scoped memory for actor_critic_forward.1']
  #allocation5 [shape = 'u8[512]{0}', space=smem, size = 0x200, scoped, tag = 'prefetched SMEM operand 0']
  %s0 = inlined_call_operand.vmem [shape: s32[16], index: 0, kind: input, shape index: {}]
  %s1 = inlined_call_operand.vmem [shape: bf16[2,256,128], index: 1, kind: input, shape index: {}]
  %s2 = inlined_call_operand.vmem [shape: bf16[128,128], index: 2, kind: input, shape index: {}]
  %s3 = inlined_call_operand.vmem [shape: f32[1,128], index: 3, kind: input, shape index: {}]
  %s4 = inlined_call_operand.vmem [shape: bf16[128,384], index: 4, kind: input, shape index: {}]
  %s5 = inlined_call_operand.vmem [shape: f32[1,384], index: 5, kind: input, shape index: {}]
  %s6 = inlined_call_operand.vmem [shape: f32[2,8,384], index: 6, kind: input, shape index: {}]
  %s7 = inlined_call_operand.vmem [shape: f32[2,8,128], index: 7, kind: output, shape index: {0}]
  %s8 = inlined_call_operand.vmem [shape: f32[2,8,256], index: 8, kind: output, shape index: {1}]
  %s9 = inlined_call_operand.vmem [shape: f32[2,1,128], index: 9, kind: output, shape index: {2}]
  %10 = xla_tuple %s7, %s8, %s9
  %s11 = sld [smem:[#allocation0]]
  $region73: #{actor_critic_forward.1} parent=0
    _
  %s13 = ssub.s32 1, %s11
  %s14 = scalar_select 0, %s13, %s11
  %s15 = sshll.u32 %s0, 4
  %s16 = int_to_ptr.vmem [resolvable:$true] %s15
  %18 = dma.vmem_to_smem %s16, 16, [#allocation5], [#allocation4]
  %19 = dma.done [#allocation4], 16
  %20 = sfence
  loop: start=0, step=1, limit=4
  $region2: #{actor_critic_forward.1} parent=0 // loop_pre_header
    _
  $region3: #{actor_critic_forward.1} parent=0 // loop_header
    %s22 = sphi 0, %s26
    %p23 = scmp.ge.s32.totalorder %s22, 4
    %s32 = sphi 0, %s34
    %s35 = sphi 0, %s32
    %s36 = sphi 0, %s35
    %s52 = sphi 0, %s36
    %s56 = sphi 0, %s56
    %s58 = sphi 0, %s56
    %s59 = sphi 0, %s58
    %s73 = sphi 0, %s59
    %s77 = sphi 0, %s77
    %s79 = sphi 0, %s77
    %s80 = sphi 0, %s79
    %s94 = sphi 0, %s80
    %s98 = sphi 0, %s98
    %s100 = sphi 0, %s98
    %s101 = sphi 0, %s100
    %s115 = sphi 0, %s101
    %s119 = sphi 0, %s119
    %s121 = sphi 0, %s119
    %s122 = sphi 0, %s121
    %s136 = sphi 0, %s122
    %s142 = sphi 0, %s144
    %s145 = sphi 0, %s142
    %s146 = sphi 0, %s145
    %s162 = sphi 0, %s146
    %s168 = sphi 0, %s170
    %s171 = sphi 0, %s168
    %s172 = sphi 0, %s171
    %s188 = sphi 0, %s172
    %s194 = sphi 0, %s196
    %s197 = sphi 0, %s194
    %s198 = sphi 0, %s197
    %s214 = sphi 0, %s198
    %s220 = sphi 0, %s222
    %s223 = sphi 0, %s220
    %s224 = sphi 0, %s223
    %s240 = sphi 0, %s224
  $region4: #{actor_critic_forward.1} parent=0 // loop_header_branch
    %25 = sbr.rel (%p23) target = $region8
  $region5: #{actor_critic_forward.1} parent=0 // loop_body
    %s27 = ssub.s32 %s22, 1
    %s28 = ssub.s32 %s22, 2
    %s29 = sadd.s32 %s22, 1
    %s30 = ssub.s32 %s22, %s29
    %p31 = scmp.eq.s32.totalorder %s30, 0
    %s33 = sadd.s32 %s32, 1
    %s34 = scalar_select %p31, %s32, %s33
    %p37 = pneg %p31
    %p38 = scmp.eq.s32.totalorder %s22, 1
    %p39 = por %p37, %p38
    %p40 = scmp.ne.s32.totalorder %s32, %s35
    %p41 = scmp.eq.s32.totalorder %s22, 0
    %p42 = por %p40, %p41
    %p43 = scmp.ne.s32.totalorder %s32, %s35
    %p44 = scmp.eq.s32.totalorder %s27, 1
    %p45 = por %p43, %p44
    %p46 = scmp.ne.s32.totalorder %s35, %s36
    %p47 = scmp.eq.s32.totalorder %s27, 0
    %p48 = por %p46, %p47
    %p49 = scmp.ne.s32.totalorder %s35, %s36
    %p50 = scmp.eq.s32.totalorder %s28, 1
    %p51 = por %p49, %p50
    %p53 = scmp.ne.s32.totalorder %s36, %s52
    %p54 = scmp.eq.s32.totalorder %s28, 0
    %p55 = por %p53, %p54
    %s57 = sadd.s32 %s56, 1
    %p60 = scmp.eq.s32.totalorder %s22, 1
    %p61 = scmp.ne.s32.totalorder %s56, %s58
    %p62 = scmp.eq.s32.totalorder %s22, 0
    %p63 = por %p61, %p62
    %p64 = scmp.ne.s32.totalorder %s56, %s58
    %p65 = scmp.eq.s32.totalorder %s27, 1
    %p66 = por %p64, %p65
    %p67 = scmp.ne.s32.totalorder %s58, %s59
    %p68 = scmp.eq.s32.totalorder %s27, 0
    %p69 = por %p67, %p68
    %p70 = scmp.ne.s32.totalorder %s58, %s59
    %p71 = scmp.eq.s32.totalorder %s28, 1
    %p72 = por %p70, %p71
    %p74 = scmp.ne.s32.totalorder %s59, %s73
    %p75 = scmp.eq.s32.totalorder %s28, 0
    %p76 = por %p74, %p75
    %s78 = sadd.s32 %s77, 1
    %p81 = scmp.eq.s32.totalorder %s22, 1
    %p82 = scmp.ne.s32.totalorder %s77, %s79
    %p83 = scmp.eq.s32.totalorder %s22, 0
    %p84 = por %p82, %p83
    %p85 = scmp.ne.s32.totalorder %s77, %s79
    %p86 = scmp.eq.s32.totalorder %s27, 1
    %p87 = por %p85, %p86
    %p88 = scmp.ne.s32.totalorder %s79, %s80
    %p89 = scmp.eq.s32.totalorder %s27, 0
    %p90 = por %p88, %p89
    %p91 = scmp.ne.s32.totalorder %s79, %s80
    %p92 = scmp.eq.s32.totalorder %s28, 1
    %p93 = por %p91, %p92
    %p95 = scmp.ne.s32.totalorder %s80, %s94
    %p96 = scmp.eq.s32.totalorder %s28, 0
    %p97 = por %p95, %p96
    %s99 = sadd.s32 %s98, 1
    %p102 = scmp.eq.s32.totalorder %s22, 1
    %p103 = scmp.ne.s32.totalorder %s98, %s100
    %p104 = scmp.eq.s32.totalorder %s22, 0
    %p105 = por %p103, %p104
    %p106 = scmp.ne.s32.totalorder %s98, %s100
    %p107 = scmp.eq.s32.totalorder %s27, 1
    %p108 = por %p106, %p107
    %p109 = scmp.ne.s32.totalorder %s100, %s101
    %p110 = scmp.eq.s32.totalorder %s27, 0
    %p111 = por %p109, %p110
    %p112 = scmp.ne.s32.totalorder %s100, %s101
    %p113 = scmp.eq.s32.totalorder %s28, 1
    %p114 = por %p112, %p113
    %p116 = scmp.ne.s32.totalorder %s101, %s115
    %p117 = scmp.eq.s32.totalorder %s28, 0
    %p118 = por %p116, %p117
    %s120 = sadd.s32 %s119, 1
    %p123 = scmp.eq.s32.totalorder %s22, 1
    %p124 = scmp.ne.s32.totalorder %s119, %s121
    %p125 = scmp.eq.s32.totalorder %s22, 0
    %p126 = por %p124, %p125
    %p127 = scmp.ne.s32.totalorder %s119, %s121
    %p128 = scmp.eq.s32.totalorder %s27, 1
    %p129 = por %p127, %p128
    %p130 = scmp.ne.s32.totalorder %s121, %s122
    %p131 = scmp.eq.s32.totalorder %s27, 0
    %p132 = por %p130, %p131
    %p133 = scmp.ne.s32.totalorder %s121, %s122
    %p134 = scmp.eq.s32.totalorder %s28, 1
    %p135 = por %p133, %p134
    %p137 = scmp.ne.s32.totalorder %s122, %s136
    %p138 = scmp.eq.s32.totalorder %s28, 0
    %p139 = por %p137, %p138
    %s140 = ssub.s32 %s22, %s29
    %p141 = scmp.eq.s32.totalorder %s140, 0
    %s143 = sadd.s32 %s142, 1
    %s144 = scalar_select %p141, %s142, %s143
    %p147 = pneg %p141
    %p148 = scmp.eq.s32.totalorder %s22, 1
    %p149 = por %p147, %p148
    %p150 = scmp.ne.s32.totalorder %s142, %s145
    %p151 = scmp.eq.s32.totalorder %s22, 0
    %p152 = por %p150, %p151
    %p153 = scmp.ne.s32.totalorder %s142, %s145
    %p154 = scmp.eq.s32.totalorder %s27, 1
    %p155 = por %p153, %p154
    %p156 = scmp.ne.s32.totalorder %s145, %s146
    %p157 = scmp.eq.s32.totalorder %s27, 0
    %p158 = por %p156, %p157
    %p159 = scmp.ne.s32.totalorder %s145, %s146
    %p160 = scmp.eq.s32.totalorder %s28, 1
    %p161 = por %p159, %p160
    %p163 = scmp.ne.s32.totalorder %s146, %s162
    %p164 = scmp.eq.s32.totalorder %s28, 0
    %p165 = por %p163, %p164
    %s166 = ssub.s32 %s22, %s29
    %p167 = scmp.eq.s32.totalorder %s166, 0
    %s169 = sadd.s32 %s168, 1
    %s170 = scalar_select %p167, %s168, %s169
    %p173 = pneg %p167
    %p174 = scmp.eq.s32.totalorder %s22, 1
    %p175 = por %p173, %p174
    %p176 = scmp.ne.s32.totalorder %s168, %s171
    %p177 = scmp.eq.s32.totalorder %s22, 0
    %p178 = por %p176, %p177
    %p179 = scmp.ne.s32.totalorder %s168, %s171
    %p180 = scmp.eq.s32.totalorder %s27, 1
    %p181 = por %p179, %p180
    %p182 = scmp.ne.s32.totalorder %s171, %s172
    %p183 = scmp.eq.s32.totalorder %s27, 0
    %p184 = por %p182, %p183
    %p185 = scmp.ne.s32.totalorder %s171, %s172
    %p186 = scmp.eq.s32.totalorder %s28, 1
    %p187 = por %p185, %p186
    %p189 = scmp.ne.s32.totalorder %s172, %s188
    %p190 = scmp.eq.s32.totalorder %s28, 0
    %p191 = por %p189, %p190
    %s192 = ssub.s32 %s22, %s29
    %p193 = scmp.eq.s32.totalorder %s192, 0
    %s195 = sadd.s32 %s194, 1
    %s196 = scalar_select %p193, %s194, %s195
    %p199 = pneg %p193
    %p200 = scmp.eq.s32.totalorder %s22, 1
    %p201 = por %p199, %p200
    %p202 = scmp.ne.s32.totalorder %s194, %s197
    %p203 = scmp.eq.s32.totalorder %s22, 0
    %p204 = por %p202, %p203
    %p205 = scmp.ne.s32.totalorder %s194, %s197
    %p206 = scmp.eq.s32.totalorder %s27, 1
    %p207 = por %p205, %p206
    %p208 = scmp.ne.s32.totalorder %s197, %s198
    %p209 = scmp.eq.s32.totalorder %s27, 0
    %p210 = por %p208, %p209
    %p211 = scmp.ne.s32.totalorder %s197, %s198
    %p212 = scmp.eq.s32.totalorder %s28, 1
    %p213 = por %p211, %p212
    %p215 = scmp.ne.s32.totalorder %s198, %s214
    %p216 = scmp.eq.s32.totalorder %s28, 0
    %p217 = por %p215, %p216
    %s218 = ssub.s32 %s22, %s29
    %p219 = scmp.eq.s32.totalorder %s218, 0
    %s221 = sadd.s32 %s220, 1
    %s222 = scalar_select %p219, %s220, %s221
    %p225 = pneg %p219
    %p226 = scmp.eq.s32.totalorder %s22, 1
    %p227 = por %p225, %p226
    %p228 = scmp.ne.s32.totalorder %s220, %s223
    %p229 = scmp.eq.s32.totalorder %s22, 0
    %p230 = por %p228, %p229
    %p231 = scmp.ne.s32.totalorder %s220, %s223
    %p232 = scmp.eq.s32.totalorder %s27, 1
    %p233 = por %p231, %p232
    %p234 = scmp.ne.s32.totalorder %s223, %s224
    %p235 = scmp.eq.s32.totalorder %s27, 0
    %p236 = por %p234, %p235
    %p237 = scmp.ne.s32.totalorder %s223, %s224
    %p238 = scmp.eq.s32.totalorder %s28, 1
    %p239 = por %p237, %p238
    %p241 = scmp.ne.s32.totalorder %s224, %s240
    %p242 = scmp.eq.s32.totalorder %s28, 0
    %p243 = por %p241, %p242
    %p244 = scmp.le.s32.totalorder 1, %s22
    %p245 = scmp.lt.s32.totalorder %s22, 3
    %p246 = pnand %p244, %p245
    %p247 = pneg %p246
    // Predicated region
    $region9: #{actor_critic_forward.1} parent=5 // pred_check
      _
    $region10: #{actor_critic_forward.1} parent=5 // pred_check_branch
      %249 = sbr.rel (%p246) target = $region12
    $region11: #{actor_critic_forward.1} parent=5 // pred_region
      %s250 = ssub.s32 %s22, 1
      // Predicated region
      $region13: #{actor_critic_forward.1} parent=11 // pred_check
        %p251 = pneg %p69
      $region14: #{actor_critic_forward.1} parent=11 // pred_check_branch
        %253 = sbr.rel (%p251) target = $region16
      $region15: #{actor_critic_forward.1} parent=11 // pred_region
        _
      $region16: #{actor_critic_forward.1} parent=11 // pred_fallthru
        _
      // Predicated region
      $region17: #{actor_critic_forward.1} parent=11 // pred_check
        %p254 = pneg %p90
      $region18: #{actor_critic_forward.1} parent=11 // pred_check_branch
        %256 = sbr.rel (%p254) target = $region20
      $region19: #{actor_critic_forward.1} parent=11 // pred_region
        _
      $region20: #{actor_critic_forward.1} parent=11 // pred_fallthru
        _
      // Predicated region
      $region21: #{actor_critic_forward.1} parent=11 // pred_check
        %p257 = pneg %p111
      $region22: #{actor_critic_forward.1} parent=11 // pred_check_branch
        %259 = sbr.rel (%p257) target = $region24
      $region23: #{actor_critic_forward.1} parent=11 // pred_region
        _
      $region24: #{actor_critic_forward.1} parent=11 // pred_fallthru
        _
      // Predicated region
      $region25: #{actor_critic_forward.1} parent=11 // pred_check
        %p260 = pneg %p132
      $region26: #{actor_critic_forward.1} parent=11 // pred_check_branch
        %262 = sbr.rel (%p260) target = $region28
      $region27: #{actor_critic_forward.1} parent=11 // pred_region
        _
      $region28: #{actor_critic_forward.1} parent=11 // pred_fallthru
        _
    $region12: #{actor_critic_forward.1} parent=5 // pred_fallthru
      _
    %p263 = scmp.lt.s32.totalorder %s22, 2
    // Predicated region
    $region29: #{actor_critic_forward.1} parent=5 // pred_check
      %p264 = pneg %p263
    $region30: #{actor_critic_forward.1} parent=5 // pred_check_branch
      %266 = sbr.rel (%p264) target = $region32
    $region31: #{actor_critic_forward.1} parent=5 // pred_region
      // Predicated region
      $region33: #{actor_critic_forward.1} parent=31 // pred_check
        %p267 = pneg %p42
      $region34: #{actor_critic_forward.1} parent=31 // pred_check_branch
        %269 = sbr.rel (%p267) target = $region36
      $region35: #{actor_critic_forward.1} parent=31 // pred_region
        %p270 = scmp.lt.s32.totalorder %s22, 1
        %s271 = scalar_select %p270, %s22, 1
        %s272 = smul.addr %s271, 32
        %s273 = smul.addr %s272, 4
        %s274 = scalar_lea.vmem %s1, %s273
      $region36: #{actor_critic_forward.1} parent=31 // pred_fallthru
        _
      // Predicated region
      $region37: #{actor_critic_forward.1} parent=31 // pred_check
        %p275 = pneg %p152
      $region38: #{actor_critic_forward.1} parent=31 // pred_check_branch
        %277 = sbr.rel (%p275) target = $region40
      $region39: #{actor_critic_forward.1} parent=31 // pred_region
        %p278 = scmp.lt.s32.totalorder %s22, 1
        %s279 = scalar_select %p278, %s22, 1
        %s280 = smul.addr %s279, 3
        %s281 = smul.addr %s280, 8
        %s282 = scalar_lea.vmem %s6, %s281
      $region40: #{actor_critic_forward.1} parent=31 // pred_fallthru
        _
    $region32: #{actor_critic_forward.1} parent=5 // pred_fallthru
      _
    %p283 = scmp.le.s32.totalorder 1, %s22
    %p284 = scmp.lt.s32.totalorder %s22, 3
    %p285 = pnand %p283, %p284
    %p286 = pneg %p285
    // Predicated region
    $region41: #{actor_critic_forward.1} parent=5 // pred_check
      _
    $region42: #{actor_critic_forward.1} parent=5 // pred_check_branch
      %288 = sbr.rel (%p285) target = $region44
    $region43: #{actor_critic_forward.1} parent=5 // pred_region
      %s289 = ssub.s32 %s22, 1
      %p290 = scmp.lt.s32.totalorder %s27, 1
      %s291 = scalar_select %p290, %s27, 1
      %s292 = smul.addr %s291, 32
      %s293 = smul.addr %s292, 4
      %s294 = scalar_lea.vmem %s1, %s293
      %p295 = pneg %p48
      %p296 = pneg %p45
      %p297 = pneg %p69
      %p298 = pneg %p66
      %p299 = pneg %p90
      %p300 = pneg %p87
      %p301 = pneg %p111
      %p302 = pneg %p108
      %p303 = pneg %p132
      %p304 = pneg %p129
      %p305 = scmp.lt.s32.totalorder %s27, 1
      %s306 = scalar_select %p305, %s27, 1
      %s307 = smul.addr %s306, 3
      %s308 = smul.addr %s307, 8
      %s309 = scalar_lea.vmem %s6, %s308
      %p310 = pneg %p158
      %p311 = pneg %p155
      %p312 = pneg %p184
      %p313 = pneg %p181
      %p314 = scmp.lt.s32.totalorder %s27, 1
      %s315 = scalar_select %p314, %s27, 1
      %s316 = smul.addr %s315, 8
      %s317 = scalar_lea.vmem %s7, %s316
      %p318 = pneg %p210
      %p319 = pneg %p207
      %p320 = scmp.lt.s32.totalorder %s27, 1
      %s321 = scalar_select %p320, %s27, 1
      %s322 = smul.addr %s321, 2
      %s323 = smul.addr %s322, 8
      %s324 = scalar_lea.vmem %s8, %s323
      %p325 = pneg %p236
      %p326 = pneg %p233
      %p327 = scmp.lt.s32.totalorder %s27, 1
      %s328 = scalar_select %p327, %s27, 1
      %s329 = scalar_lea.vmem %s9, %s328
      %p330 = scmp.lt.s32.totalorder %s27, 1
      %s331 = scalar_select %p330, %s27, 1
      %s332 = smul.addr %s331, 32
      %s333 = smul.addr %s332, 4
      %s334 = scalar_lea.vmem %s1, %s333
      %p335 = scmp.lt.s32.totalorder %s27, 1
      %s336 = scalar_select %p335, %s27, 1
      %s337 = smul.addr %s336, 3
      %s338 = smul.addr %s337, 8
      %s339 = scalar_lea.vmem %s6, %s338
      %p340 = scmp.lt.s32.totalorder %s27, 1
      %s341 = scalar_select %p340, %s27, 1
      %s342 = smul.addr %s341, 8
      %s343 = scalar_lea.vmem %s7, %s342
      %p344 = scmp.lt.s32.totalorder %s27, 1
      %s345 = scalar_select %p344, %s27, 1
      %s346 = smul.addr %s345, 2
      %s347 = smul.addr %s346, 8
      %s348 = scalar_lea.vmem %s8, %s347
      %p349 = scmp.lt.s32.totalorder %s27, 1
      %s350 = scalar_select %p349, %s27, 1
      %s351 = scalar_lea.vmem %s9, %s350
      %v353 = vld [vmem:[%s2] sm:$0xf]
      %v354 = vld [vmem:[%s2 + $0x4] sm:$0xf]
      %v355 = vld [vmem:[%s2 + $0x8] sm:$0xf]
      %v356 = vld [vmem:[%s2 + $0xc] sm:$0xf]
      %v357 = vld [vmem:[%s2 + $0x10] sm:$0xf]
      %v358 = vld [vmem:[%s2 + $0x14] sm:$0xf]
      %v359 = vld [vmem:[%s2 + $0x18] sm:$0xf]
      %v360 = vld [vmem:[%s2 + $0x1c] sm:$0xf]
      %v361 = vld [vmem:[%s2 + $0x20] sm:$0xf]
      %v362 = vld [vmem:[%s2 + $0x24] sm:$0xf]
      %v363 = vld [vmem:[%s2 + $0x28] sm:$0xf]
      %v364 = vld [vmem:[%s2 + $0x2c] sm:$0xf]
      %v365 = vld [vmem:[%s2 + $0x30] sm:$0xf]
      %v366 = vld [vmem:[%s2 + $0x34] sm:$0xf]
      %v367 = vld [vmem:[%s2 + $0x38] sm:$0xf]
      %v368 = vld [vmem:[%s2 + $0x3c] sm:$0xf]
      %v369 = vld [vmem:[%s3] sm:$0x1]
      %v370 = vld [vmem:[%s334] sm:$0xf]
      %v371 = vld [vmem:[%s334 + $0x4] sm:$0xf]
      %v372 = vld [vmem:[%s334 + $0x8] sm:$0xf]
      %v373 = vld [vmem:[%s334 + $0xc] sm:$0xf]
      %v374 = vld [vmem:[%s334 + $0x10] sm:$0xf]
      %v375 = vld [vmem:[%s334 + $0x14] sm:$0xf]
      %v376 = vld [vmem:[%s334 + $0x18] sm:$0xf]
      %v377 = vld [vmem:[%s334 + $0x1c] sm:$0xf]
      %v378 = vld [vmem:[%s334 + $0x20] sm:$0xf]
      %v379 = vld [vmem:[%s334 + $0x24] sm:$0xf]
      %v380 = vld [vmem:[%s334 + $0x28] sm:$0xf]
      %v381 = vld [vmem:[%s334 + $0x2c] sm:$0xf]
      %v382 = vld [vmem:[%s334 + $0x30] sm:$0xf]
      %v383 = vld [vmem:[%s334 + $0x34] sm:$0xf]
      %v384 = vld [vmem:[%s334 + $0x38] sm:$0xf]
      %v385 = vld [vmem:[%s334 + $0x3c] sm:$0xf]
      %v386 = vld [vmem:[%s334 + $0x40] sm:$0xf]
      %v387 = vld [vmem:[%s334 + $0x44] sm:$0xf]
      %v388 = vld [vmem:[%s334 + $0x48] sm:$0xf]
      %v389 = vld [vmem:[%s334 + $0x4c] sm:$0xf]
      %v390 = vld [vmem:[%s334 + $0x50] sm:$0xf]
      %v391 = vld [vmem:[%s334 + $0x54] sm:$0xf]
      %v392 = vld [vmem:[%s334 + $0x58] sm:$0xf]
      %v393 = vld [vmem:[%s334 + $0x5c] sm:$0xf]
      %v394 = vld [vmem:[%s334 + $0x60] sm:$0xf]
      %v395 = vld [vmem:[%s334 + $0x64] sm:$0xf]
      %v396 = vld [vmem:[%s334 + $0x68] sm:$0xf]
      %v397 = vld [vmem:[%s334 + $0x6c] sm:$0xf]
      %v398 = vld [vmem:[%s334 + $0x70] sm:$0xf]
      %v399 = vld [vmem:[%s334 + $0x74] sm:$0xf]
      %v400 = vld [vmem:[%s334 + $0x78] sm:$0xf]
      %v401 = vld [vmem:[%s334 + $0x7c] sm:$0xf]
      %v403 = vlaneseq
      %v404 = vshrl.u32 %v403, 7
      %v405 = vsub.s32 0, %v404
      %v406 = vrot.slane %v369, %v405
      %v440 = vunpack.c.l.b16 %v370
      %v441 = vunpack.c.l.b16 %v371
      %v442 = vunpack.c.l.b16 %v372
      %v443 = vunpack.c.l.b16 %v373
      %v444 = vunpack.c.l.b16 %v374
      %v445 = vunpack.c.l.b16 %v375
      %v446 = vunpack.c.l.b16 %v376
      %v447 = vunpack.c.l.b16 %v377
      %v448 = vunpack.c.l.b16 %v378
      %v449 = vunpack.c.l.b16 %v379
      %v450 = vunpack.c.l.b16 %v380
      %v451 = vunpack.c.l.b16 %v381
      %v452 = vunpack.c.l.b16 %v382
      %v453 = vunpack.c.l.b16 %v383
      %v454 = vunpack.c.l.b16 %v384
      %v455 = vunpack.c.l.b16 %v385
      %v456 = vunpack.c.l.b16 %v386
      %v457 = vunpack.c.l.b16 %v387
      %v458 = vunpack.c.l.b16 %v388
      %v459 = vunpack.c.l.b16 %v389
      %v460 = vunpack.c.l.b16 %v390
      %v461 = vunpack.c.l.b16 %v391
      %v462 = vunpack.c.l.b16 %v392
      %v463 = vunpack.c.l.b16 %v393
      %v464 = vunpack.c.l.b16 %v394
      %v465 = vunpack.c.l.b16 %v395
      %v466 = vunpack.c.l.b16 %v396
      %v467 = vunpack.c.l.b16 %v397
      %v468 = vunpack.c.l.b16 %v398
      %v469 = vunpack.c.l.b16 %v399
      %v470 = vunpack.c.l.b16 %v400
      %v471 = vunpack.c.l.b16 %v401
      %v472 = vpack.c.b16 %v441, %v440
      %v473 = vpack.c.b16 %v443, %v442
      %v474 = vpack.c.b16 %v445, %v444
      %v475 = vpack.c.b16 %v447, %v446
      %v476 = vpack.c.b16 %v449, %v448
      %v477 = vpack.c.b16 %v451, %v450
      %v478 = vpack.c.b16 %v453, %v452
      %v479 = vpack.c.b16 %v455, %v454
      %v480 = vpack.c.b16 %v457, %v456
      %v481 = vpack.c.b16 %v459, %v458
      %v482 = vpack.c.b16 %v461, %v460
      %v483 = vpack.c.b16 %v463, %v462
      %v484 = vpack.c.b16 %v465, %v464
      %v485 = vpack.c.b16 %v467, %v466
      %v486 = vpack.c.b16 %v469, %v468
      %v487 = vpack.c.b16 %v471, %v470
      %v520 = vunpack.c.l.b16 %v353
      %v521 = vunpack.c.l.b16 %v354
      %v522 = vunpack.c.l.b16 %v355
      %v523 = vunpack.c.l.b16 %v356
      %v524 = vunpack.c.l.b16 %v357
      %v525 = vunpack.c.l.b16 %v358
      %v526 = vunpack.c.l.b16 %v359
      %v527 = vunpack.c.l.b16 %v360
      %v528 = vunpack.c.l.b16 %v361
      %v529 = vunpack.c.l.b16 %v362
      %v530 = vunpack.c.l.b16 %v363
      %v531 = vunpack.c.l.b16 %v364
      %v532 = vunpack.c.l.b16 %v365
      %v533 = vunpack.c.l.b16 %v366
      %v534 = vunpack.c.l.b16 %v367
      %v535 = vunpack.c.l.b16 %v368
      %v536 = vpack.c.b16 %v521, %v520
      %v537 = vpack.c.b16 %v523, %v522
      %v538 = vpack.c.b16 %v525, %v524
      %v539 = vpack.c.b16 %v527, %v526
      %v540 = vpack.c.b16 %v529, %v528
      %v541 = vpack.c.b16 %v531, %v530
      %v542 = vpack.c.b16 %v533, %v532
      %v543 = vpack.c.b16 %v535, %v534
      %552 = vmatprep.subr.bf16.mxu0 0
      %553 = vmatpush1.bf16.msra.mxu0 %v536
      %554 = vmatprep.subr.bf16.mxu0 0
      %555 = vmatpush1.bf16.msra.mxu0 %v537
      %556 = vmatprep.subr.bf16.mxu0 0
      %557 = vmatpush1.bf16.msra.mxu0 %v538
      %558 = vmatprep.subr.bf16.mxu0 0
      %559 = vmatpush1.bf16.msra.mxu0 %v539
      %560 = vmatprep.subr.bf16.mxu0 0
      %561 = vmatpush1.bf16.msra.mxu0 %v540
      %562 = vmatprep.subr.bf16.mxu0 0
      %563 = vmatpush1.bf16.msra.mxu0 %v541
      %564 = vmatprep.subr.bf16.mxu0 0
      %565 = vmatpush1.bf16.msra.mxu0 %v542
      %566 = vmatprep.subr.bf16.mxu0 0
      %567 = vmatpush1.bf16.msra.mxu0 %v543
      %568 = vmatprep.subr.bf16.mxu0 0
      %569 = vmatpush1.bf16.msra.mxu0 0
      %570 = vmatprep.subr.bf16.mxu0 0
      %571 = vmatpush1.bf16.msra.mxu0 0
      %572 = vmatprep.subr.bf16.mxu0 0
      %573 = vmatpush1.bf16.msra.mxu0 0
      %574 = vmatprep.subr.bf16.mxu0 0
      %575 = vmatpush1.bf16.msra.mxu0 0
      %576 = vmatprep.subr.bf16.mxu0 0
      %577 = vmatpush1.bf16.msra.mxu0 0
      %578 = vmatprep.subr.bf16.mxu0 0
      %579 = vmatpush1.bf16.msra.mxu0 0
      %580 = vmatprep.subr.bf16.mxu0 0
      %581 = vmatpush1.bf16.msra.mxu0 0
      %582 = vmatprep.subr.bf16.mxu0 0
      %583 = vmatpush1.bf16.msra.mxu0 0
      %584 = vmatprep.mubr.bf16.mxu0 0
      %585 = vmatmul.mubr.bf16.gmra.mrb[0].mxu0 %v472
      %v586 = vpop.f32.mrb[0].mxu0
      %v587 = vadd.f32 %v406, %v586
      %v588 = vpop.f32.mrb[0].mxu0
      %v589 = vpop.f32.mrb[0].mxu0
      %v590 = vadd.f32 %v406, %v589
      %v591 = vpop.f32.mrb[0].mxu0
      %592 = vmatprep.mubr.bf16.mxu0 0
      %593 = vmatmul.mubr.bf16.gmra.mrb[0].mxu0 %v473
      %v594 = vpop.f32.mrb[0].mxu0
      %v595 = vadd.f32 %v406, %v594
      %v596 = vpop.f32.mrb[0].mxu0
      %v597 = vpop.f32.mrb[0].mxu0
      %v598 = vadd.f32 %v406, %v597
      %v599 = vpop.f32.mrb[0].mxu0
      %600 = vmatprep.mubr.bf16.mxu0 0
      %601 = vmatmul.mubr.bf16.gmra.mrb[0].mxu0 %v474
      %v602 = vpop.f32.mrb[0].mxu0
      %v603 = vadd.f32 %v406, %v602
      %v604 = vpop.f32.mrb[0].mxu0
      %v605 = vpop.f32.mrb[0].mxu0
      %v606 = vadd.f32 %v406, %v605
      %v607 = vpop.f32.mrb[0].mxu0
      %608 = vmatprep.mubr.bf16.mxu0 0
      %609 = vmatmul.mubr.bf16.gmra.mrb[0].mxu0 %v475
      %v610 = vpop.f32.mrb[0].mxu0
      %v611 = vadd.f32 %v406, %v610
      %v612 = vpop.f32.mrb[0].mxu0
      %v613 = vpop.f32.mrb[0].mxu0
      %v614 = vadd.f32 %v406, %v613
      %v615 = vpop.f32.mrb[0].mxu0
      %616 = vmatprep.mubr.bf16.mxu0 0
      %617 = vmatmul.mubr.bf16.gmra.mrb[0].mxu0 %v476
      %v618 = vpop.f32.mrb[0].mxu0
      %v619 = vadd.f32 %v406, %v618
      %v620 = vpop.f32.mrb[0].mxu0
      %v621 = vpop.f32.mrb[0].mxu0
      %v622 = vadd.f32 %v406, %v621
      %v623 = vpop.f32.mrb[0].mxu0
      %624 = vmatprep.mubr.bf16.mxu0 0
      %625 = vmatmul.mubr.bf16.gmra.mrb[0].mxu0 %v477
      %v626 = vpop.f32.mrb[0].mxu0
      %v627 = vadd.f32 %v406, %v626
      %v628 = vpop.f32.mrb[0].mxu0
      %v629 = vpop.f32.mrb[0].mxu0
      %v630 = vadd.f32 %v406, %v629
      %v631 = vpop.f32.mrb[0].mxu0
      %632 = vmatprep.mubr.bf16.mxu0 0
      %633 = vmatmul.mubr.bf16.gmra.mrb[0].mxu0 %v478
      %v634 = vpop.f32.mrb[0].mxu0
      %v635 = vadd.f32 %v406, %v634
      %v636 = vpop.f32.mrb[0].mxu0
      %v637 = vpop.f32.mrb[0].mxu0
      %v638 = vadd.f32 %v406, %v637
      %v639 = vpop.f32.mrb[0].mxu0
      %640 = vmatprep.mubr.bf16.mxu0 0
      %641 = vmatmul.mubr.bf16.gmra.mrb[0].mxu0 %v479
      %v642 = vpop.f32.mrb[0].mxu0
      %v643 = vadd.f32 %v406, %v642
      %v644 = vpop.f32.mrb[0].mxu0
      %v645 = vpop.f32.mrb[0].mxu0
      %v646 = vadd.f32 %v406, %v645
      %v647 = vpop.f32.mrb[0].mxu0
      %648 = vmatprep.mubr.bf16.mxu0 0
      %649 = vmatmul.mubr.bf16.gmra.mrb[0].mxu0 %v480
      %v650 = vpop.f32.mrb[0].mxu0
      %v651 = vadd.f32 %v406, %v650
      %v652 = vpop.f32.mrb[0].mxu0
      %v653 = vpop.f32.mrb[0].mxu0
      %v654 = vadd.f32 %v406, %v653
      %v655 = vpop.f32.mrb[0].mxu0
      %656 = vmatprep.mubr.bf16.mxu0 0
      %657 = vmatmul.mubr.bf16.gmra.mrb[0].mxu0 %v481
      %v658 = vpop.f32.mrb[0].mxu0
      %v659 = vadd.f32 %v406, %v658
      %v660 = vpop.f32.mrb[0].mxu0
      %v661 = vpop.f32.mrb[0].mxu0
      %v662 = vadd.f32 %v406, %v661
      %v663 = vpop.f32.mrb[0].mxu0
      %664 = vmatprep.mubr.bf16.mxu0 0
      %665 = vmatmul.mubr.bf16.gmra.mrb[0].mxu0 %v482
      %v666 = vpop.f32.mrb[0].mxu0
      %v667 = vadd.f32 %v406, %v666
      %v668 = vpop.f32.mrb[0].mxu0
      %v669 = vpop.f32.mrb[0].mxu0
      %v670 = vadd.f32 %v406, %v669
      %v671 = vpop.f32.mrb[0].mxu0
      %672 = vmatprep.mubr.bf16.mxu0 0
      %673 = vmatmul.mubr.bf16.gmra.mrb[0].mxu0 %v483
      %v674 = vpop.f32.mrb[0].mxu0
      %v675 = vadd.f32 %v406, %v674
      %v676 = vpop.f32.mrb[0].mxu0
      %v677 = vpop.f32.mrb[0].mxu0
      %v678 = vadd.f32 %v406, %v677
      %v679 = vpop.f32.mrb[0].mxu0
      %680 = vmatprep.mubr.bf16.mxu0 0
      %681 = vmatmul.mubr.bf16.gmra.mrb[0].mxu0 %v484
      %v682 = vpop.f32.mrb[0].mxu0
      %v683 = vadd.f32 %v406, %v682
      %v684 = vpop.f32.mrb[0].mxu0
      %v685 = vpop.f32.mrb[0].mxu0
      %v686 = vadd.f32 %v406, %v685
      %v687 = vpop.f32.mrb[0].mxu0
      %688 = vmatprep.mubr.bf16.mxu0 0
      %689 = vmatmul.mubr.bf16.gmra.mrb[0].mxu0 %v485
      %v690 = vpop.f32.mrb[0].mxu0
      %v691 = vadd.f32 %v406, %v690
      %v692 = vpop.f32.mrb[0].mxu0
      %v693 = vpop.f32.mrb[0].mxu0
      %v694 = vadd.f32 %v406, %v693
      %v695 = vpop.f32.mrb[0].mxu0
      %696 = vmatprep.mubr.bf16.mxu0 0
      %697 = vmatmul.mubr.bf16.gmra.mrb[0].mxu0 %v486
      %v698 = vpop.f32.mrb[0].mxu0
      %v699 = vadd.f32 %v406, %v698
      %v700 = vpop.f32.mrb[0].mxu0
      %v701 = vpop.f32.mrb[0].mxu0
      %v702 = vadd.f32 %v406, %v701
      %v703 = vpop.f32.mrb[0].mxu0
      %704 = vmatprep.mubr.bf16.mxu0 0
      %705 = vmatmul.mubr.bf16.gmra.mrb[0].mxu0 %v487
      %v706 = vpop.f32.mrb[0].mxu0
      %v707 = vadd.f32 %v406, %v706
      %v708 = vpop.f32.mrb[0].mxu0
      %v709 = vpop.f32.mrb[0].mxu0
      %v710 = vadd.f32 %v406, %v709
      %v711 = vpop.f32.mrb[0].mxu0
      %712 = vdwg.mxu0
      %v713 = vmax.f32 %v587, 0.0
      %v714 = vmax.f32 %v590, 0.0
      %v715 = vmax.f32 %v595, 0.0
      %v716 = vmax.f32 %v598, 0.0
      %v717 = vmax.f32 %v603, 0.0
      %v718 = vmax.f32 %v606, 0.0
      %v719 = vmax.f32 %v611, 0.0
      %v720 = vmax.f32 %v614, 0.0
      %v721 = vmax.f32 %v619, 0.0
      %v722 = vmax.f32 %v622, 0.0
      %v723 = vmax.f32 %v627, 0.0
      %v724 = vmax.f32 %v630, 0.0
      %v725 = vmax.f32 %v635, 0.0
      %v726 = vmax.f32 %v638, 0.0
      %v727 = vmax.f32 %v643, 0.0
      %v728 = vmax.f32 %v646, 0.0
      %v729 = vmax.f32 %v651, 0.0
      %v730 = vmax.f32 %v654, 0.0
      %v731 = vmax.f32 %v659, 0.0
      %v732 = vmax.f32 %v662, 0.0
      %v733 = vmax.f32 %v667, 0.0
      %v734 = vmax.f32 %v670, 0.0
      %v735 = vmax.f32 %v675, 0.0
      %v736 = vmax.f32 %v678, 0.0
      %v737 = vmax.f32 %v683, 0.0
      %v738 = vmax.f32 %v686, 0.0
      %v739 = vmax.f32 %v691, 0.0
      %v740 = vmax.f32 %v694, 0.0
      %v741 = vmax.f32 %v699, 0.0
      %v742 = vmax.f32 %v702, 0.0
      %v743 = vmax.f32 %v707, 0.0
      %v744 = vmax.f32 %v710, 0.0
      %745 = vst [vmem:[#allocation2] sm:$0xff] %v713
      %746 = vst [vmem:[#allocation2 + $0x8] sm:$0xff] %v714
      %747 = vst [vmem:[#allocation2 + $0x10] sm:$0xff] %v715
      %748 = vst [vmem:[#allocation2 + $0x18] sm:$0xff] %v716
      %749 = vst [vmem:[#allocation2 + $0x20] sm:$0xff] %v717
      %750 = vst [vmem:[#allocation2 + $0x28] sm:$0xff] %v718
      %751 = vst [vmem:[#allocation2 + $0x30] sm:$0xff] %v719
      %752 = vst [vmem:[#allocation2 + $0x38] sm:$0xff] %v720
      %753 = vst [vmem:[#allocation2 + $0x40] sm:$0xff] %v721
      %754 = vst [vmem:[#allocation2 + $0x48] sm:$0xff] %v722
      %755 = vst [vmem:[#allocation2 + $0x50] sm:$0xff] %v723
      %756 = vst [vmem:[#allocation2 + $0x58] sm:$0xff] %v724
      %757 = vst [vmem:[#allocation2 + $0x60] sm:$0xff] %v725
      %758 = vst [vmem:[#allocation2 + $0x68] sm:$0xff] %v726
      %759 = vst [vmem:[#allocation2 + $0x70] sm:$0xff] %v727
      %760 = vst [vmem:[#allocation2 + $0x78] sm:$0xff] %v728
      %761 = vst [vmem:[#allocation2 + $0x80] sm:$0xff] %v729
      %762 = vst [vmem:[#allocation2 + $0x88] sm:$0xff] %v730
      %763 = vst [vmem:[#allocation2 + $0x90] sm:$0xff] %v731
      %764 = vst [vmem:[#allocation2 + $0x98] sm:$0xff] %v732
      %765 = vst [vmem:[#allocation2 + $0xa0] sm:$0xff] %v733
      %766 = vst [vmem:[#allocation2 + $0xa8] sm:$0xff] %v734
      %767 = vst [vmem:[#allocation2 + $0xb0] sm:$0xff] %v735
      %768 = vst [vmem:[#allocation2 + $0xb8] sm:$0xff] %v736
      %769 = vst [vmem:[#allocation2 + $0xc0] sm:$0xff] %v737
      %770 = vst [vmem:[#allocation2 + $0xc8] sm:$0xff] %v738
      %771 = vst [vmem:[#allocation2 + $0xd0] sm:$0xff] %v739
      %772 = vst [vmem:[#allocation2 + $0xd8] sm:$0xff] %v740
      %773 = vst [vmem:[#allocation2 + $0xe0] sm:$0xff] %v741
      %774 = vst [vmem:[#allocation2 + $0xe8] sm:$0xff] %v742
      %775 = vst [vmem:[#allocation2 + $0xf0] sm:$0xff] %v743
      %776 = vst [vmem:[#allocation2 + $0xf8] sm:$0xff] %v744
      %v777 = vadd.f32 %v713, %v714
      %v778 = vadd.f32 %v777, %v715
      %v779 = vadd.f32 %v778, %v716
      %v780 = vadd.f32 %v779, %v717
      %v781 = vadd.f32 %v780, %v718
      %v782 = vadd.f32 %v781, %v719
      %v783 = vadd.f32 %v782, %v720
      %v784 = vadd.f32 %v783, %v721
      %v785 = vadd.f32 %v784, %v722
      %v786 = vadd.f32 %v785, %v723
      %v787 = vadd.f32 %v786, %v724
      %v788 = vadd.f32 %v787, %v725
      %v789 = vadd.f32 %v788, %v726
      %v790 = vadd.f32 %v789, %v727
      %v791 = vadd.f32 %v790, %v728
      %v792 = vadd.f32 %v791, %v729
      %v793 = vadd.f32 %v792, %v730
      %v794 = vadd.f32 %v793, %v731
      %v795 = vadd.f32 %v794, %v732
      %v796 = vadd.f32 %v795, %v733
      %v797 = vadd.f32 %v796, %v734
      %v798 = vadd.f32 %v797, %v735
      %v799 = vadd.f32 %v798, %v736
      %v800 = vadd.f32 %v799, %v737
      %v801 = vadd.f32 %v800, %v738
      %v802 = vadd.f32 %v801, %v739
      %v803 = vadd.f32 %v802, %v740
      %v804 = vadd.f32 %v803, %v741
      %v805 = vadd.f32 %v804, %v742
      %v806 = vadd.f32 %v805, %v743
      %v807 = vadd.f32 %v806, %v744
      %v808 = vrot.slane %v807, 4
      %v809 = vadd.f32 %v807, %v808
      %v810 = vrot.slane %v809, 2
      %v811 = vadd.f32 %v809, %v810
      %v812 = vrot.slane %v811, 1
      %v813 = vadd.f32 %v811, %v812
      %v814 = vrcp.pop 256.0
      %v815 = vmul.f32 %v813, %v814
      %816 = vst [vmem:[%s351] sm:$0x1] %v815
      %s817 = smul.u32 %s27, 8
      %s818 = sld [smem:[#allocation5 + %s817]]
      %s819 = scalar_lea.vmem [#allocation2], %s818
      %v820 = vld [vmem:[%s819] sm:$0x1]
      %821 = vst [vmem:[#allocation3] sm:$0x1] %v820
      %s822 = sadd.s32 %s817, 1
      %s823 = sld [smem:[#allocation5 + %s822]]
      %s824 = scalar_lea.vmem [#allocation2], %s823
      %v825 = vld [vmem:[%s824] sm:$0x1]
      %826 = vst [vmem:[#allocation3 + $0x1] sm:$0x1] %v825
      %s827 = sadd.s32 %s817, 2
      %s828 = sld [smem:[#allocation5 + %s827]]
      %s829 = scalar_lea.vmem [#allocation2], %s828
      %v830 = vld [vmem:[%s829] sm:$0x1]
      %831 = vst [vmem:[#allocation3 + $0x2] sm:$0x1] %v830
      %s832 = sadd.s32 %s817, 3
      %s833 = sld [smem:[#allocation5 + %s832]]
      %s834 = scalar_lea.vmem [#allocation2], %s833
      %v835 = vld [vmem:[%s834] sm:$0x1]
      %836 = vst [vmem:[#allocation3 + $0x3] sm:$0x1] %v835
      %s837 = sadd.s32 %s817, 4
      %s838 = sld [smem:[#allocation5 + %s837]]
      %s839 = scalar_lea.vmem [#allocation2], %s838
      %v840 = vld [vmem:[%s839] sm:$0x1]
      %841 = vst [vmem:[#allocation3 + $0x4] sm:$0x1] %v840
      %s842 = sadd.s32 %s817, 5
      %s843 = sld [smem:[#allocation5 + %s842]]
      %s844 = scalar_lea.vmem [#allocation2], %s843
      %v845 = vld [vmem:[%s844] sm:$0x1]
      %846 = vst [vmem:[#allocation3 + $0x5] sm:$0x1] %v845
      %s847 = sadd.s32 %s817, 6
      %s848 = sld [smem:[#allocation5 + %s847]]
      %s849 = scalar_lea.vmem [#allocation2], %s848
      %v850 = vld [vmem:[%s849] sm:$0x1]
      %851 = vst [vmem:[#allocation3 + $0x6] sm:$0x1] %v850
      %s852 = sadd.s32 %s817, 7
      %s853 = sld [smem:[#allocation5 + %s852]]
      %s854 = scalar_lea.vmem [#allocation2], %s853
      %v855 = vld [vmem:[%s854] sm:$0x1]
      %856 = vst [vmem:[#allocation3 + $0x7] sm:$0x1] %v855
      %v857 = vld [vmem:[#allocation3] sm:$0xff]
      %v858 = vpack.c.bf16 %v857, %v857
      %v859 = vld [vmem:[%s4] sm:$0xff]
      %v860 = vld [vmem:[%s4 + $0x8] sm:$0xf]
      %v861 = vld [vmem:[%s4 + $0xc] sm:$0xff]
      %v862 = vld [vmem:[%s4 + $0x14] sm:$0xf]
      %v863 = vld [vmem:[%s4 + $0x18] sm:$0xff]
      %v864 = vld [vmem:[%s4 + $0x20] sm:$0xf]
      %v865 = vld [vmem:[%s4 + $0x24] sm:$0xff]
      %v866 = vld [vmem:[%s4 + $0x2c] sm:$0xf]
      %v867 = vld [vmem:[%s4 + $0x30] sm:$0xff]
      %v868 = vld [vmem:[%s4 + $0x38] sm:$0xf]
      %v869 = vld [vmem:[%s4 + $0x3c] sm:$0xff]
      %v870 = vld [vmem:[%s4 + $0x44] sm:$0xf]
      %v871 = vld [vmem:[%s4 + $0x48] sm:$0xff]
      %v872 = vld [vmem:[%s4 + $0x50] sm:$0xf]
      %v873 = vld [vmem:[%s4 + $0x54] sm:$0xff]
      %v874 = vld [vmem:[%s4 + $0x5c] sm:$0xf]
      %v875 = vld [vmem:[%s4 + $0x60] sm:$0xff]
      %v876 = vld [vmem:[%s4 + $0x68] sm:$0xf]
      %v877 = vld [vmem:[%s4 + $0x6c] sm:$0xff]
      %v878 = vld [vmem:[%s4 + $0x74] sm:$0xf]
      %v879 = vld [vmem:[%s4 + $0x78] sm:$0xff]
      %v880 = vld [vmem:[%s4 + $0x80] sm:$0xf]
      %v881 = vld [vmem:[%s4 + $0x84] sm:$0xff]
      %v882 = vld [vmem:[%s4 + $0x8c] sm:$0xf]
      %v883 = vld [vmem:[%s4 + $0x90] sm:$0xff]
      %v884 = vld [vmem:[%s4 + $0x98] sm:$0xf]
      %v885 = vld [vmem:[%s4 + $0x9c] sm:$0xff]
      %v886 = vld [vmem:[%s4 + $0xa4] sm:$0xf]
      %v887 = vld [vmem:[%s4 + $0xa8] sm:$0xff]
      %v888 = vld [vmem:[%s4 + $0xb0] sm:$0xf]
      %v889 = vld [vmem:[%s4 + $0xb4] sm:$0xff]
      %v890 = vld [vmem:[%s4 + $0xbc] sm:$0xf]
      %v891 = vld [vmem:[%s5] sm:$0x7]
      %v893 = vlaneseq
      %v894 = vshrl.u32 %v893, 7
      %v895 = vsub.s32 0, %v894
      %v896 = vrot.slane %v891, %v895
      %v897 = vlaneseq
      %v898 = vshrl.u32 %v897, 7
      %v899 = vsub.s32 1, %v898
      %v900 = vrot.slane %v891, %v899
      %v901 = vlaneseq
      %v902 = vshrl.u32 %v901, 7
      %v903 = vsub.s32 2, %v902
      %v904 = vrot.slane %v891, %v903
      %v940 = vunpack.c.l.b16 %v859
      %v941 = vunpack.c.h.b16 %v859
      %v942 = vunpack.c.l.b16 %v860
      %v943 = vunpack.c.l.b16 %v861
      %v944 = vunpack.c.h.b16 %v861
      %v945 = vunpack.c.l.b16 %v862
      %v946 = vunpack.c.l.b16 %v863
      %v947 = vunpack.c.h.b16 %v863
      %v948 = vunpack.c.l.b16 %v864
      %v949 = vunpack.c.l.b16 %v865
      %v950 = vunpack.c.h.b16 %v865
      %v951 = vunpack.c.l.b16 %v866
      %v952 = vunpack.c.l.b16 %v867
      %v953 = vunpack.c.h.b16 %v867
      %v954 = vunpack.c.l.b16 %v868
      %v955 = vunpack.c.l.b16 %v869
      %v956 = vunpack.c.h.b16 %v869
      %v957 = vunpack.c.l.b16 %v870
      %v958 = vunpack.c.l.b16 %v871
      %v959 = vunpack.c.h.b16 %v871
      %v960 = vunpack.c.l.b16 %v872
      %v961 = vunpack.c.l.b16 %v873
      %v962 = vunpack.c.h.b16 %v873
      %v963 = vunpack.c.l.b16 %v874
      %v964 = vunpack.c.l.b16 %v875
      %v965 = vunpack.c.h.b16 %v875
      %v966 = vunpack.c.l.b16 %v876
      %v967 = vunpack.c.l.b16 %v877
      %v968 = vunpack.c.h.b16 %v877
      %v969 = vunpack.c.l.b16 %v878
      %v970 = vunpack.c.l.b16 %v879
      %v971 = vunpack.c.h.b16 %v879
      %v972 = vunpack.c.l.b16 %v880
      %v973 = vunpack.c.l.b16 %v881
      %v974 = vunpack.c.h.b16 %v881
      %v975 = vunpack.c.l.b16 %v882
      %v976 = vunpack.c.l.b16 %v883
      %v977 = vunpack.c.h.b16 %v883
      %v978 = vunpack.c.l.b16 %v884
      %v979 = vunpack.c.l.b16 %v885
      %v980 = vunpack.c.h.b16 %v885
      %v981 = vunpack.c.l.b16 %v886
      %v982 = vunpack.c.l.b16 %v887
      %v983 = vunpack.c.h.b16 %v887
      %v984 = vunpack.c.l.b16 %v888
      %v985 = vunpack.c.l.b16 %v889
      %v986 = vunpack.c.h.b16 %v889
      %v987 = vunpack.c.l.b16 %v890
      %v988 = vpack.c.b16 %v943, %v940
      %v989 = vpack.c.b16 %v944, %v941
      %v990 = vpack.c.b16 %v945, %v942
      %v991 = vpack.c.b16 %v949, %v946
      %v992 = vpack.c.b16 %v950, %v947
      %v993 = vpack.c.b16 %v951, %v948
      %v994 = vpack.c.b16 %v955, %v952
      %v995 = vpack.c.b16 %v956, %v953
      %v996 = vpack.c.b16 %v957, %v954
      %v997 = vpack.c.b16 %v961, %v958
      %v998 = vpack.c.b16 %v962, %v959
      %v999 = vpack.c.b16 %v963, %v960
      %v1000 = vpack.c.b16 %v967, %v964
      %v1001 = vpack.c.b16 %v968, %v965
      %v1002 = vpack.c.b16 %v969, %v966
      %v1003 = vpack.c.b16 %v973, %v970
      %v1004 = vpack.c.b16 %v974, %v971
      %v1005 = vpack.c.b16 %v975, %v972
      %v1006 = vpack.c.b16 %v979, %v976
      %v1007 = vpack.c.b16 %v980, %v977
      %v1008 = vpack.c.b16 %v981, %v978
      %v1009 = vpack.c.b16 %v985, %v982
      %v1010 = vpack.c.b16 %v986, %v983
      %v1011 = vpack.c.b16 %v987, %v984
      %1036 = vmatprep.subr.bf16.mxu0 %v989
      %1037 = vmatpush1.bf16.msra.mxu0 %v988
      %1038 = vmatprep.subr.bf16.mxu0 %v992
      %1039 = vmatpush1.bf16.msra.mxu0 %v991
      %1040 = vmatprep.subr.bf16.mxu0 %v995
      %1041 = vmatpush1.bf16.msra.mxu0 %v994
      %1042 = vmatprep.subr.bf16.mxu0 %v998
      %1043 = vmatpush1.bf16.msra.mxu0 %v997
      %1044 = vmatprep.subr.bf16.mxu0 %v1001
      %1045 = vmatpush1.bf16.msra.mxu0 %v1000
      %1046 = vmatprep.subr.bf16.mxu0 %v1004
      %1047 = vmatpush1.bf16.msra.mxu0 %v1003
      %1048 = vmatprep.subr.bf16.mxu0 %v1007
      %1049 = vmatpush1.bf16.msra.mxu0 %v1006
      %1050 = vmatprep.subr.bf16.mxu0 %v1010
      %1051 = vmatpush1.bf16.msra.mxu0 %v1009
      %1052 = vmatprep.subr.bf16.mxu0 0
      %1053 = vmatpush1.bf16.msra.mxu0 0
      %1054 = vmatprep.subr.bf16.mxu0 0
      %1055 = vmatpush1.bf16.msra.mxu0 0
      %1056 = vmatprep.subr.bf16.mxu0 0
      %1057 = vmatpush1.bf16.msra.mxu0 0
      %1058 = vmatprep.subr.bf16.mxu0 0
      %1059 = vmatpush1.bf16.msra.mxu0 0
      %1060 = vmatprep.subr.bf16.mxu0 0
      %1061 = vmatpush1.bf16.msra.mxu0 0
      %1062 = vmatprep.subr.bf16.mxu0 0
      %1063 = vmatpush1.bf16.msra.mxu0 0
      %1064 = vmatprep.subr.bf16.mxu0 0
      %1065 = vmatpush1.bf16.msra.mxu0 0
      %1066 = vmatprep.subr.bf16.mxu0 0
      %1067 = vmatpush1.bf16.msra.mxu0 0
      %1068 = vmatprep.mubr.bf16.mxu0 0
      %1069 = vmatmul.mubr.bf16.gmra.mrb[0].mxu0 %v858
      %v1070 = vpop.f32.mrb[0].mxu0
      %v1071 = vadd.f32 %v896, %v1070
      %v1072 = vpop.f32.mrb[0].mxu0
      %v1073 = vadd.f32 %v900, %v1072
      %v1074 = vpop.f32.mrb[0].mxu0
      %v1075 = vpop.f32.mrb[0].mxu0
      %1076 = vdwg.mxu0
      %1077 = vmatprep.subr.bf16.mxu0 0
      %1078 = vmatpush1.bf16.msra.mxu0 %v990
      %1079 = vmatprep.subr.bf16.mxu0 0
      %1080 = vmatpush1.bf16.msra.mxu0 %v993
      %1081 = vmatprep.subr.bf16.mxu0 0
      %1082 = vmatpush1.bf16.msra.mxu0 %v996
      %1083 = vmatprep.subr.bf16.mxu0 0
      %1084 = vmatpush1.bf16.msra.mxu0 %v999
      %1085 = vmatprep.subr.bf16.mxu0 0
      %1086 = vmatpush1.bf16.msra.mxu0 %v1002
      %1087 = vmatprep.subr.bf16.mxu0 0
      %1088 = vmatpush1.bf16.msra.mxu0 %v1005
      %1089 = vmatprep.subr.bf16.mxu0 0
      %1090 = vmatpush1.bf16.msra.mxu0 %v1008
      %1091 = vmatprep.subr.bf16.mxu0 0
      %1092 = vmatpush1.bf16.msra.mxu0 %v1011
      %1093 = vmatprep.subr.bf16.mxu0 0
      %1094 = vmatpush1.bf16.msra.mxu0 0
      %1095 = vmatprep.subr.bf16.mxu0 0
      %1096 = vmatpush1.bf16.msra.mxu0 0
      %1097 = vmatprep.subr.bf16.mxu0 0
      %1098 = vmatpush1.bf16.msra.mxu0 0
      %1099 = vmatprep.subr.bf16.mxu0 0
      %1100 = vmatpush1.bf16.msra.mxu0 0
      %1101 = vmatprep.subr.bf16.mxu0 0
      %1102 = vmatpush1.bf16.msra.mxu0 0
      %1103 = vmatprep.subr.bf16.mxu0 0
      %1104 = vmatpush1.bf16.msra.mxu0 0
      %1105 = vmatprep.subr.bf16.mxu0 0
      %1106 = vmatpush1.bf16.msra.mxu0 0
      %1107 = vmatprep.subr.bf16.mxu0 0
      %1108 = vmatpush1.bf16.msra.mxu0 0
      %1109 = vmatprep.mubr.bf16.mxu0 0
      %1110 = vmatmul.mubr.bf16.gmra.mrb[0].mxu0 %v858
      %v1111 = vpop.f32.mrb[0].mxu0
      %v1112 = vadd.f32 %v904, %v1111
      %v1113 = vpop.f32.mrb[0].mxu0
      %v1114 = vpop.f32.mrb[0].mxu0
      %v1115 = vpop.f32.mrb[0].mxu0
      %1116 = vdwg.mxu0
      %v1117 = vld [vmem:[%s339] sm:$0xff]
      %v1118 = vld [vmem:[%s339 + $0x8] sm:$0xff]
      %v1119 = vld [vmem:[%s339 + $0x10] sm:$0xff]
      %v1120 = vadd.f32 %v1071, %v1117
      %v1121 = vadd.f32 %v1073, %v1118
      %v1122 = vadd.f32 %v1112, %v1119
      %1123 = vmax.xlane.f32.xlu0 %v1120
      %v1124 = vpop.xlane.xlu0 %1123
      %v1125 = vsub.f32 %v1120, %v1124
      %v1126 = vmul.f32 %v1125, 1.442695
      %v1127 = vpow.pop %v1126
      %1128 = vadd.xlane.f32.xlu0 %v1127
      %v1129 = vpop.xlane.xlu0 %1128
      %v1130 = vlog2.pop %v1129
      %v1131 = vmul.f32 %v1130, 0.6931472
      %v1132 = vsub.f32 %v1125, %v1131
      %1133 = vst [vmem:[%s343] sm:$0xff] %v1132
      %v1134 = vmax.f32 %v1121, %v1122
      %1135 = vmax.xlane.f32.xlu0 %v1134
      %v1136 = vpop.xlane.xlu0 %1135
      %v1137 = vsub.f32 %v1121, %v1136
      %v1138 = vsub.f32 %v1122, %v1136
      %v1139 = vmul.f32 %v1137, 1.442695
      %v1140 = vpow.pop %v1139
      %v1141 = vmul.f32 %v1138, 1.442695
      %v1142 = vpow.pop %v1141
      %v1143 = vadd.f32 %v1140, %v1142
      %1144 = vadd.xlane.f32.xlu0 %v1143
      %v1145 = vpop.xlane.xlu0 %1144
      %v1146 = vlog2.pop %v1145
      %v1147 = vmul.f32 %v1146, 0.6931472
      %v1148 = vsub.f32 %v1137, %v1147
      %v1149 = vsub.f32 %v1138, %v1147
      %1150 = vst [vmem:[%s348] sm:$0xff] %v1148
      %1151 = vst [vmem:[%s348 + $0x8] sm:$0xff] %v1149
      %p1152 = scmp.lt.s32.totalorder %s27, 1
      %s1153 = scalar_select %p1152, %s27, 1
      %s1154 = smul.addr %s1153, 8
      %s1155 = scalar_lea.vmem %s7, %s1154
      %p1156 = scmp.lt.s32.totalorder %s27, 1
      %s1157 = scalar_select %p1156, %s27, 1
      %s1158 = smul.addr %s1157, 2
      %s1159 = smul.addr %s1158, 8
      %s1160 = scalar_lea.vmem %s8, %s1159
      %p1161 = scmp.lt.s32.totalorder %s27, 1
      %s1162 = scalar_select %p1161, %s27, 1
      %s1163 = scalar_lea.vmem %s9, %s1162
      // Predicated region
      $region45: #{actor_critic_forward.1} parent=43 // pred_check
        %p1164 = pneg %p181
      $region46: #{actor_critic_forward.1} parent=43 // pred_check_branch
        %1166 = sbr.rel (%p1164) target = $region48
      $region47: #{actor_critic_forward.1} parent=43 // pred_region
        _
      $region48: #{actor_critic_forward.1} parent=43 // pred_fallthru
        _
      // Predicated region
      $region49: #{actor_critic_forward.1} parent=43 // pred_check
        %p1167 = pneg %p207
      $region50: #{actor_critic_forward.1} parent=43 // pred_check_branch
        %1169 = sbr.rel (%p1167) target = $region52
      $region51: #{actor_critic_forward.1} parent=43 // pred_region
        _
      $region52: #{actor_critic_forward.1} parent=43 // pred_fallthru
        _
      // Predicated region
      $region53: #{actor_critic_forward.1} parent=43 // pred_check
        %p1170 = pneg %p233
      $region54: #{actor_critic_forward.1} parent=43 // pred_check_branch
        %1172 = sbr.rel (%p1170) target = $region56
      $region55: #{actor_critic_forward.1} parent=43 // pred_region
        _
      $region56: #{actor_critic_forward.1} parent=43 // pred_fallthru
        _
    $region44: #{actor_critic_forward.1} parent=5 // pred_fallthru
      _
    %p1173 = scmp.le.s32.totalorder 2, %s22
    // Predicated region
    $region57: #{actor_critic_forward.1} parent=5 // pred_check
      %p1174 = pneg %p1173
    $region58: #{actor_critic_forward.1} parent=5 // pred_check_branch
      %1176 = sbr.rel (%p1174) target = $region60
    $region59: #{actor_critic_forward.1} parent=5 // pred_region
      %s1177 = ssub.s32 %s22, 2
      // Predicated region
      $region61: #{actor_critic_forward.1} parent=59 // pred_check
        %p1178 = pneg %p187
      $region62: #{actor_critic_forward.1} parent=59 // pred_check_branch
        %1180 = sbr.rel (%p1178) target = $region64
      $region63: #{actor_critic_forward.1} parent=59 // pred_region
        %p1181 = scmp.lt.s32.totalorder %s28, 1
        %s1182 = scalar_select %p1181, %s28, 1
        %s1183 = smul.addr %s1182, 8
        %s1184 = scalar_lea.vmem %s7, %s1183
      $region64: #{actor_critic_forward.1} parent=59 // pred_fallthru
        _
      // Predicated region
      $region65: #{actor_critic_forward.1} parent=59 // pred_check
        %p1185 = pneg %p213
      $region66: #{actor_critic_forward.1} parent=59 // pred_check_branch
        %1187 = sbr.rel (%p1185) target = $region68
      $region67: #{actor_critic_forward.1} parent=59 // pred_region
        %p1188 = scmp.lt.s32.totalorder %s28, 1
        %s1189 = scalar_select %p1188, %s28, 1
        %s1190 = smul.addr %s1189, 2
        %s1191 = smul.addr %s1190, 8
        %s1192 = scalar_lea.vmem %s8, %s1191
      $region68: #{actor_critic_forward.1} parent=59 // pred_fallthru
        _
      // Predicated region
      $region69: #{actor_critic_forward.1} parent=59 // pred_check
        %p1193 = pneg %p239
      $region70: #{actor_critic_forward.1} parent=59 // pred_check_branch
        %1195 = sbr.rel (%p1193) target = $region72
      $region71: #{actor_critic_forward.1} parent=59 // pred_region
        %p1196 = scmp.lt.s32.totalorder %s28, 1
        %s1197 = scalar_select %p1196, %s28, 1
        %s1198 = scalar_lea.vmem %s9, %s1197
      $region72: #{actor_critic_forward.1} parent=59 // pred_fallthru
        _
    $region60: #{actor_critic_forward.1} parent=5 // pred_fallthru
      _
  $region6: #{actor_critic_forward.1} parent=0 // loop_footer
    %s26 = sadd.s32 1, %s22
  $region7: #{actor_critic_forward.1} parent=0 // loop_footer_branch
    %21 = sbr.rel target = $region3
  $region8: #{actor_critic_forward.1} parent=0 // loop_exit
    _

</llo_original>
